<compile_context>
chip_gen: v7x
topology: tpu7x:2x2x1
jax: 0.10.0
libtpu: 0.0.40
codegen_flags: <defaults>
</compile_context>

<pallas_src>
import math
from functools import partial

import jax
import jax.numpy as jnp
import numpy as np
from jax.experimental import pallas as pl
from jax.experimental.pallas import tpu as pltpu


def _gelu_exact(x):
    """Exact (erf-based) GELU. erf is evaluated with the Abramowitz–Stegun
    7.1.26 polynomial (|err| < 1.5e-7), so only exp / basic VPU ops are used."""
    z = x * (1.0 / math.sqrt(2.0))
    az = jnp.abs(z)
    t = 1.0 / (1.0 + 0.3275911 * az)
    poly = t * (0.254829592
                + t * (-0.284496736
                       + t * (1.421413741
                              + t * (-1.453152027 + t * 1.061405429))))
    erf_abs = 1.0 - poly * jnp.exp(-az * az)
    erf = jnp.where(z >= 0, erf_abs, -erf_abs)
    return 0.5 * x * (1.0 + erf)


def encoder_block_kernel(
    x_ref, cos_ref, sinf_ref, sinb_ref,
    ln1_g_ref, ln1_b_ref,
    wqk_ref, bqk_ref, wv_ref, bv_ref,
    wo_ref, bo_ref,
    ln2_g_ref, ln2_b_ref,
    w1_ref, b1_ref, w2_ref, b2_ref,
    out_ref,
    attn_ref,                       # VMEM scratch (L, C) f32
    *, num_heads, head_dim, eps,
):
    f32 = jnp.float32
    bf16 = jnp.bfloat16
    C = num_heads * head_dim

    x_in = x_ref[0]                                              # (L, C) f32

    # ---- LayerNorm 1 (eps inside rsqrt, biased variance, affine) in f32 ----
    mu = jnp.mean(x_in, axis=-1, keepdims=True)
    var = jnp.mean((x_in - mu) ** 2, axis=-1, keepdims=True)
    xn = (x_in - mu) * jax.lax.rsqrt(var + eps)
    xn = xn * ln1_g_ref[...] + ln1_b_ref[...]

    # ---- RoPE on the query path (no MXU matmul, no CxC permutation table) ----
    #   q[2i]   = x[2i]  *cos - x[2i+1]*sin
    #   q[2i+1] = x[2i+1]*cos + x[2i]  *sin
    # implemented as two static lane rolls + parity-masked sin tables:
    #   sinf = -sin on even lanes / 0 on odd   (pairs with xn[l, c+1])
    #   sinb =  sin on odd lanes  / 0 on even  (pairs with xn[l, c-1])
    fwd = jnp.roll(xn, -1, axis=-1)          # fwd[l, c] = xn[l, c+1]
    bwd = jnp.roll(xn, 1, axis=-1)           # bwd[l, c] = xn[l, c-1]
    q_in = xn * cos_ref[...] + fwd * sinf_ref[...] + bwd * sinb_ref[...]

    # ---- nn.MultiheadAttention(batch_first=True): query=key=rotated, value=ln1(x) ----
    q_in_b = q_in.astype(bf16)
    xn_b = xn.astype(bf16)
    scale = 1.0 / math.sqrt(head_dim)

    # Fused Q|K projection: one (L, C) x (C, 2C) matmul, lane-aligned slices.
    qk = jnp.dot(q_in_b, wqk_ref[...], preferred_element_type=f32) + bqk_ref[...]
    q = (qk[:, :C] * scale).astype(bf16)
    k = qk[:, C:].astype(bf16)
    v = (jnp.dot(xn_b, wv_ref[...], preferred_element_type=f32) + bv_ref[...]).astype(bf16)

    # Per-head attention; each head's (L, D) output is stored straight into the
    # scratch slab -> bounded live ranges, no lane-dim concatenate at the end.
    # TODO(synk): for head_dim << 128 at production sizes, batch several heads
    # per matmul pass (block-diagonal score masking) to fill the MXU contraction dim.
    for h in range(num_heads):
        sl = slice(h * head_dim, (h + 1) * head_dim)
        qh = q[:, sl]
        kh = k[:, sl]
        vh = v[:, sl]
        s = jax.lax.dot_general(qh, kh, (((1,), (1,)), ((), ())),
                                preferred_element_type=f32)       # (L, L) f32
        s = s - jnp.max(s, axis=-1, keepdims=True)
        p = jnp.exp(s)
        p = p * pl.reciprocal(jnp.sum(p, axis=-1, keepdims=True), approx=True)
        attn_ref[:, sl] = jnp.dot(p.astype(bf16), vh, preferred_element_type=f32)

    attn = jnp.dot(attn_ref[...].astype(bf16), wo_ref[...],
                   preferred_element_type=f32) + bo_ref[...]

    # dropout (eval mode) -> identity; residual
    x = attn + x_in

    # ---- LayerNorm 2 + MLPBlock (Linear -> GELU(exact erf) -> Linear) ----
    mu2 = jnp.mean(x, axis=-1, keepdims=True)
    var2 = jnp.mean((x - mu2) ** 2, axis=-1, keepdims=True)
    yn = (x - mu2) * jax.lax.rsqrt(var2 + eps)
    yn = yn * ln2_g_ref[...] + ln2_b_ref[...]

    # TODO(synk): tile the mlp_dim axis (extra 'arbitrary' grid axis + accumulator)
    # once L * mlp_dim / the MLP weights no longer fit comfortably in VMEM (v7x: 64 MiB).
    h1 = jnp.dot(yn.astype(bf16), w1_ref[...], preferred_element_type=f32) + b1_ref[...]
    h1 = _gelu_exact(h1)
    y = jnp.dot(h1.astype(bf16), w2_ref[...], preferred_element_type=f32) + b2_ref[...]

    out_ref[0] = (x + y).astype(out_ref.dtype)


def encoder_block_pallas(x, params, cosE, sin_fwd, sin_bwd, *, num_heads):
    B, L, C = x.shape
    D = C // num_heads

    kernel = partial(encoder_block_kernel, num_heads=num_heads, head_dim=D, eps=1e-6)

    bf = lambda a: a.astype(jnp.bfloat16)      # weights to bf16 (MXU fast path, half VMEM)
    wqk = jnp.concatenate([bf(params["wq"]), bf(params["wk"])], axis=1)   # (C, 2C)
    bqk = jnp.concatenate([params["bq"], params["bk"]], axis=1)           # (1, 2C)

    args = (
        x, cosE, sin_fwd, sin_bwd,
        params["ln1_g"], params["ln1_b"],
        wqk, bqk,
        bf(params["wv"]), params["bv"],
        bf(params["wo"]), params["bo"],
        params["ln2_g"], params["ln2_b"],
        bf(params["w1"]), params["b1"], bf(params["w2"]), params["b2"],
    )

    def rep_spec(arr):
        nd = arr.ndim
        # Constant index map: block never changes across the batch grid, so the
        # pipeline fetches it once.
        return pl.BlockSpec(arr.shape, lambda b, _nd=nd: (0,) * _nd)

    in_specs = [pl.BlockSpec((1, L, C), lambda b: (b, 0, 0))]
    in_specs += [rep_spec(a) for a in args[1:]]

    return pl.pallas_call(
        kernel,
        out_shape=jax.ShapeDtypeStruct((B, L, C), x.dtype),
        grid_spec=pltpu.PrefetchScalarGridSpec(
            num_scalar_prefetch=0,
            grid=(B,),
            in_specs=in_specs,
            out_specs=pl.BlockSpec((1, L, C), lambda b: (b, 0, 0)),
            scratch_shapes=[pltpu.VMEM((L, C), jnp.float32)],
        ),
        compiler_params=pltpu.CompilerParams(
            dimension_semantics=("parallel",),
            vmem_limit_bytes=48 * 1024 * 1024,   # above default scoped limits, below physical
        ),
    )(*args)


# ----------------------------- glue / setup -----------------------------

def build_rope_tables(L, num_heads, head_dim):
    """cos/sin tables (L, C) + parity-masked sin tables for the in-kernel swizzle."""
    C = num_heads * head_dim
    freqs = 1.0 / (10000.0 ** (np.arange(0, head_dim, 2, dtype=np.float32) / head_dim))
    ang = np.outer(np.arange(L, dtype=np.float32), freqs)          # (L, D//2)
    cosE = np.tile(np.repeat(np.cos(ang), 2, axis=1), (1, num_heads)).astype(np.float32)
    sinE = np.tile(np.repeat(np.sin(ang), 2, axis=1), (1, num_heads)).astype(np.float32)

    even = (np.arange(C) % 2 == 0)[None, :]
    sin_fwd = np.where(even, -sinE, 0.0).astype(np.float32)   # multiplies xn[l, c+1]
    sin_bwd = np.where(even, 0.0, sinE).astype(np.float32)    # multiplies xn[l, c-1]
    return (jnp.asarray(cosE), jnp.asarray(sinE),
            jnp.asarray(sin_fwd), jnp.asarray(sin_bwd))


def init_params(key, hidden_dim, mlp_dim):
    C, M = hidden_dim, mlp_dim
    ks = jax.random.split(key, 8)
    s = 0.05
    return {
        "ln1_g": jnp.ones((1, C), jnp.float32),
        "ln1_b": jnp.zeros((1, C), jnp.float32),
        # in_proj (stored transposed so the kernel computes x @ W^T as x @ w)
        "wq": s * jax.random.normal(ks[0], (C, C), jnp.float32),
        "wk": s * jax.random.normal(ks[1], (C, C), jnp.float32),
        "wv": s * jax.random.normal(ks[2], (C, C), jnp.float32),
        "bq": 0.01 * jax.random.normal(ks[3], (1, C), jnp.float32),
        "bk": jnp.zeros((1, C), jnp.float32),
        "bv": jnp.zeros((1, C), jnp.float32),
        "wo": s * jax.random.normal(ks[4], (C, C), jnp.float32),
        "bo": jnp.zeros((1, C), jnp.float32),
        "ln2_g": jnp.ones((1, C), jnp.float32),
        "ln2_b": jnp.zeros((1, C), jnp.float32),
        "w1": s * jax.random.normal(ks[5], (C, M), jnp.float32),
        "b1": 1e-6 * jax.random.normal(ks[6], (1, M), jnp.float32),
        "w2": s * jax.random.normal(ks[7], (M, C), jnp.float32),
        "b2": jnp.zeros((1, C), jnp.float32),
    }


def encoder_block_ref(x, params, cosE, sinE, *, num_heads):
    """Pure-JAX f32 replica of the forward pass for validation."""
    B, L, C = x.shape
    D = C // num_heads
    eps = 1e-6

    def ln(v, g, b):
        mu = jnp.mean(v, axis=-1, keepdims=True)
        var = jnp.mean((v - mu) ** 2, axis=-1, keepdims=True)
        return (v - mu) * jax.lax.rsqrt(var + eps) * g + b

    xn = ln(x, params["ln1_g"], params["ln1_b"])

    # RoPE via explicit pair math (independent of the kernel's roll/mask trick).
    cos_p = cosE[:, 0::2][None, :, :, None]
    sin_p = sinE[:, 0::2][None, :, :, None]
    xp = xn.reshape(B, L, C // 2, 2)
    x_even, x_odd = xp[..., 0:1], xp[..., 1:2]
    q_in = jnp.concatenate(
        [x_even * cos_p - x_odd * sin_p, x_even * sin_p + x_odd * cos_p],
        axis=-1).reshape(B, L, C)

    q = jnp.einsum("blc,cd->bld", q_in, params["wq"]) + params["bq"]
    k = jnp.einsum("blc,cd->bld", q_in, params["wk"]) + params["bk"]
    v = jnp.einsum("blc,cd->bld", xn, params["wv"]) + params["bv"]

    q = q.reshape(B, L, num_heads, D)
    k = k.reshape(B, L, num_heads, D)
    v = v.reshape(B, L, num_heads, D)
    s = jnp.einsum("bqhd,bkhd->bhqk", q, k) / math.sqrt(D)
    p = jax.nn.softmax(s, axis=-1)
    o = jnp.einsum("bhqk,bkhd->bqhd", p, v).reshape(B, L, C)
    attn = jnp.einsum("blc,cd->bld", o, params["wo"]) + params["bo"]

    xr = attn + x
    yn = ln(xr, params["ln2_g"], params["ln2_b"])
    h1 = jax.nn.gelu(jnp.einsum("blc,cm->blm", yn, params["w1"]) + params["b1"],
                     approximate=False)
    y = jnp.einsum("blm,mc->blc", h1, params["w2"]) + params["b2"]
    return xr + y


if __name__ == "__main__":
    # batch, seq, heads, hidden_dim, mlp_dim (hidden_dim = 128 -> lane-dense blocks)
    B, L, H, C, M = 2, 16, 4, 128, 256
    D = C // H

    key = jax.random.PRNGKey(0)
    kx, kp = jax.random.split(key)
    x = jax.random.normal(kx, (B, L, C), jnp.float32)
    params = init_params(kp, C, M)
    cosE, sinE, sin_fwd, sin_bwd = build_rope_tables(L, H, D)

    out = jax.block_until_ready(
        encoder_block_pallas(x, params, cosE, sin_fwd, sin_bwd, num_heads=H))
    ref = jax.block_until_ready(encoder_block_ref(x, params, cosE, sinE, num_heads=H))

    np.testing.assert_allclose(np.asarray(out), np.asarray(ref), rtol=3e-2, atol=3e-2)
    print("KERNEL_OK")
</pallas_src>

<mosaic_0001>
module attributes {stable_mosaic.version = 11 : i64} {
  func.func @encoder_block_kernel(%arg0: i32, %arg1: memref<1x16x128xf32, #tpu.memory_space<vmem>>, %arg2: memref<16x128xf32, #tpu.memory_space<vmem>>, %arg3: memref<16x128xf32, #tpu.memory_space<vmem>>, %arg4: memref<16x128xf32, #tpu.memory_space<vmem>>, %arg5: memref<1x128xf32, #tpu.memory_space<vmem>>, %arg6: memref<1x128xf32, #tpu.memory_space<vmem>>, %arg7: memref<128x256xbf16, #tpu.memory_space<vmem>>, %arg8: memref<1x256xf32, #tpu.memory_space<vmem>>, %arg9: memref<128x128xbf16, #tpu.memory_space<vmem>>, %arg10: memref<1x128xf32, #tpu.memory_space<vmem>>, %arg11: memref<128x128xbf16, #tpu.memory_space<vmem>>, %arg12: memref<1x128xf32, #tpu.memory_space<vmem>>, %arg13: memref<1x128xf32, #tpu.memory_space<vmem>>, %arg14: memref<1x128xf32, #tpu.memory_space<vmem>>, %arg15: memref<128x256xbf16, #tpu.memory_space<vmem>>, %arg16: memref<1x256xf32, #tpu.memory_space<vmem>>, %arg17: memref<256x128xbf16, #tpu.memory_space<vmem>>, %arg18: memref<1x128xf32, #tpu.memory_space<vmem>>, %arg19: memref<1x16x128xf32, #tpu.memory_space<vmem>>, %arg20: memref<16x128xf32, #tpu.memory_space<vmem>>) attributes {dimension_semantics = [#tpu.dimension_semantics<parallel>], iteration_bounds = array<i64: 2>, scalar_prefetch = 0 : i64, scratch_operands = 1 : i64, tpu.core_type = #tpu.core_type<tc>, window_params = [{transform_indices = @transform_0, window_bounds = array<i64: 1, 16, 128>}, {pipeline_mode = #tpu.pipeline_mode<synchronous>, transform_indices = @transform_1, window_bounds = array<i64: 16, 128>}, {pipeline_mode = #tpu.pipeline_mode<synchronous>, transform_indices = @transform_2, window_bounds = array<i64: 16, 128>}, {pipeline_mode = #tpu.pipeline_mode<synchronous>, transform_indices = @transform_3, window_bounds = array<i64: 16, 128>}, {pipeline_mode = #tpu.pipeline_mode<synchronous>, transform_indices = @transform_4, window_bounds = array<i64: 1, 128>}, {pipeline_mode = #tpu.pipeline_mode<synchronous>, transform_indices = @transform_5, window_bounds = array<i64: 1, 128>}, {pipeline_mode = #tpu.pipeline_mode<synchronous>, transform_indices = @transform_6, window_bounds = array<i64: 128, 256>}, {pipeline_mode = #tpu.pipeline_mode<synchronous>, transform_indices = @transform_7, window_bounds = array<i64: 1, 256>}, {pipeline_mode = #tpu.pipeline_mode<synchronous>, transform_indices = @transform_8, window_bounds = array<i64: 128, 128>}, {pipeline_mode = #tpu.pipeline_mode<synchronous>, transform_indices = @transform_9, window_bounds = array<i64: 1, 128>}, {pipeline_mode = #tpu.pipeline_mode<synchronous>, transform_indices = @transform_10, window_bounds = array<i64: 128, 128>}, {pipeline_mode = #tpu.pipeline_mode<synchronous>, transform_indices = @transform_11, window_bounds = array<i64: 1, 128>}, {pipeline_mode = #tpu.pipeline_mode<synchronous>, transform_indices = @transform_12, window_bounds = array<i64: 1, 128>}, {pipeline_mode = #tpu.pipeline_mode<synchronous>, transform_indices = @transform_13, window_bounds = array<i64: 1, 128>}, {pipeline_mode = #tpu.pipeline_mode<synchronous>, transform_indices = @transform_14, window_bounds = array<i64: 128, 256>}, {pipeline_mode = #tpu.pipeline_mode<synchronous>, transform_indices = @transform_15, window_bounds = array<i64: 1, 256>}, {pipeline_mode = #tpu.pipeline_mode<synchronous>, transform_indices = @transform_16, window_bounds = array<i64: 256, 128>}, {pipeline_mode = #tpu.pipeline_mode<synchronous>, transform_indices = @transform_17, window_bounds = array<i64: 1, 128>}, {transform_indices = @transform_18, window_bounds = array<i64: 1, 16, 128>}]} {
    %c0 = arith.constant 0 : index
    %c0_0 = arith.constant 0 : index
    %c0_1 = arith.constant 0 : index
    %0 = vector.load %arg1[%c0, %c0_0, %c0_1] : memref<1x16x128xf32, #tpu.memory_space<vmem>>, vector<1x16x128xf32>
    %1 = vector.shape_cast %0 : vector<1x16x128xf32> to vector<16x128xf32>
    %cst = arith.constant dense<0.000000e+00> : vector<16xf32>
    %2 = vector.multi_reduction <add>, %1, %cst [1] : vector<16x128xf32> to vector<16xf32>
    %3 = vector.shape_cast %2 : vector<16xf32> to vector<16x1xf32>
    %cst_2 = arith.constant 1.280000e+02 : f32
    %4 = vector.broadcast %cst_2 : f32 to vector<16x1xf32>
    %5 = arith.divf %3, %4 : vector<16x1xf32>
    %6 = vector.broadcast %5 : vector<16x1xf32> to vector<16x128xf32>
    %7 = arith.subf %1, %6 : vector<16x128xf32>
    %8 = arith.mulf %7, %7 : vector<16x128xf32>
    %cst_3 = arith.constant dense<0.000000e+00> : vector<16xf32>
    %9 = vector.multi_reduction <add>, %8, %cst_3 [1] : vector<16x128xf32> to vector<16xf32>
    %10 = vector.shape_cast %9 : vector<16xf32> to vector<16x1xf32>
    %cst_4 = arith.constant 1.280000e+02 : f32
    %11 = vector.broadcast %cst_4 : f32 to vector<16x1xf32>
    %12 = arith.divf %10, %11 : vector<16x1xf32>
    %13 = vector.broadcast %5 : vector<16x1xf32> to vector<16x128xf32>
    %14 = arith.subf %1, %13 : vector<16x128xf32>
    %cst_5 = arith.constant 9.99999997E-7 : f32
    %15 = vector.broadcast %cst_5 : f32 to vector<16x1xf32>
    %16 = arith.addf %12, %15 : vector<16x1xf32>
    %17 = math.rsqrt %16 : vector<16x1xf32>
    %18 = vector.broadcast %17 : vector<16x1xf32> to vector<16x128xf32>
    %19 = arith.mulf %14, %18 : vector<16x128xf32>
    %c0_6 = arith.constant 0 : index
    %c0_7 = arith.constant 0 : index
    %20 = vector.load %arg5[%c0_6, %c0_7] : memref<1x128xf32, #tpu.memory_space<vmem>>, vector<1x128xf32>
    %21 = vector.broadcast %20 : vector<1x128xf32> to vector<16x128xf32>
    %22 = arith.mulf %19, %21 : vector<16x128xf32>
    %c0_8 = arith.constant 0 : index
    %c0_9 = arith.constant 0 : index
    %23 = vector.load %arg6[%c0_8, %c0_9] : memref<1x128xf32, #tpu.memory_space<vmem>>, vector<1x128xf32>
    %24 = vector.broadcast %23 : vector<1x128xf32> to vector<16x128xf32>
    %25 = arith.addf %22, %24 : vector<16x128xf32>
    %26 = vector.extract_strided_slice %25 {offsets = [0, 1], sizes = [16, 127], strides = [1, 1]} : vector<16x128xf32> to vector<16x127xf32>
    %27 = vector.extract_strided_slice %25 {offsets = [0, 0], sizes = [16, 1], strides = [1, 1]} : vector<16x128xf32> to vector<16x1xf32>
    %28 = tpu.concatenate %26, %27 in 1 : vector<16x127xf32>, vector<16x1xf32> -> vector<16x128xf32>
    %29 = vector.extract_strided_slice %25 {offsets = [0, 127], sizes = [16, 1], strides = [1, 1]} : vector<16x128xf32> to vector<16x1xf32>
    %30 = vector.extract_strided_slice %25 {offsets = [0, 0], sizes = [16, 127], strides = [1, 1]} : vector<16x128xf32> to vector<16x127xf32>
    %31 = tpu.concatenate %29, %30 in 1 : vector<16x1xf32>, vector<16x127xf32> -> vector<16x128xf32>
    %c0_10 = arith.constant 0 : index
    %c0_11 = arith.constant 0 : index
    %32 = vector.load %arg2[%c0_10, %c0_11] : memref<16x128xf32, #tpu.memory_space<vmem>>, vector<16x128xf32>
    %33 = arith.mulf %25, %32 : vector<16x128xf32>
    %c0_12 = arith.constant 0 : index
    %c0_13 = arith.constant 0 : index
    %34 = vector.load %arg3[%c0_12, %c0_13] : memref<16x128xf32, #tpu.memory_space<vmem>>, vector<16x128xf32>
    %35 = arith.mulf %28, %34 : vector<16x128xf32>
    %36 = arith.addf %33, %35 : vector<16x128xf32>
    %c0_14 = arith.constant 0 : index
    %c0_15 = arith.constant 0 : index
    %37 = vector.load %arg4[%c0_14, %c0_15] : memref<16x128xf32, #tpu.memory_space<vmem>>, vector<16x128xf32>
    %38 = arith.mulf %31, %37 : vector<16x128xf32>
    %39 = arith.addf %36, %38 : vector<16x128xf32>
    %40 = arith.truncf %39 : vector<16x128xf32> to vector<16x128xbf16>
    %41 = arith.truncf %25 : vector<16x128xf32> to vector<16x128xbf16>
    %c0_16 = arith.constant 0 : index
    %c0_17 = arith.constant 0 : index
    %42 = vector.load %arg7[%c0_16, %c0_17] : memref<128x256xbf16, #tpu.memory_space<vmem>>, vector<128x256xbf16>
    %cst_18 = arith.constant dense<0.000000e+00> : vector<16x256xf32>
    %43 = tpu.matmul %40, %42, %cst_18 {dimension_numbers = #tpu.dot_dimension_numbers<[1], [0], [0], [1], [0, 0, 1, 1], [], []>} : vector<16x128xbf16>, vector<128x256xbf16>, vector<16x256xf32> -> vector<16x256xf32>
    %c0_19 = arith.constant 0 : index
    %c0_20 = arith.constant 0 : index
    %44 = vector.load %arg8[%c0_19, %c0_20] : memref<1x256xf32, #tpu.memory_space<vmem>>, vector<1x256xf32>
    %45 = vector.broadcast %44 : vector<1x256xf32> to vector<16x256xf32>
    %46 = arith.addf %43, %45 : vector<16x256xf32>
    %47 = vector.extract_strided_slice %46 {offsets = [0, 0], sizes = [16, 128], strides = [1, 1]} : vector<16x256xf32> to vector<16x128xf32>
    %cst_21 = arith.constant 0.176776692 : f32
    %48 = vector.broadcast %cst_21 : f32 to vector<16x128xf32>
    %49 = arith.mulf %47, %48 : vector<16x128xf32>
    %50 = arith.truncf %49 : vector<16x128xf32> to vector<16x128xbf16>
    %51 = vector.extract_strided_slice %46 {offsets = [0, 128], sizes = [16, 128], strides = [1, 1]} : vector<16x256xf32> to vector<16x128xf32>
    %52 = arith.truncf %51 : vector<16x128xf32> to vector<16x128xbf16>
    %c0_22 = arith.constant 0 : index
    %c0_23 = arith.constant 0 : index
    %53 = vector.load %arg9[%c0_22, %c0_23] : memref<128x128xbf16, #tpu.memory_space<vmem>>, vector<128x128xbf16>
    %cst_24 = arith.constant dense<0.000000e+00> : vector<16x128xf32>
    %54 = tpu.matmul %41, %53, %cst_24 {dimension_numbers = #tpu.dot_dimension_numbers<[1], [0], [0], [1], [0, 0, 1, 1], [], []>} : vector<16x128xbf16>, vector<128x128xbf16>, vector<16x128xf32> -> vector<16x128xf32>
    %c0_25 = arith.constant 0 : index
    %c0_26 = arith.constant 0 : index
    %55 = vector.load %arg10[%c0_25, %c0_26] : memref<1x128xf32, #tpu.memory_space<vmem>>, vector<1x128xf32>
    %56 = vector.broadcast %55 : vector<1x128xf32> to vector<16x128xf32>
    %57 = arith.addf %54, %56 : vector<16x128xf32>
    %58 = arith.truncf %57 : vector<16x128xf32> to vector<16x128xbf16>
    %59 = vector.extract_strided_slice %50 {offsets = [0, 0], sizes = [16, 32], strides = [1, 1]} : vector<16x128xbf16> to vector<16x32xbf16>
    %60 = vector.extract_strided_slice %52 {offsets = [0, 0], sizes = [16, 32], strides = [1, 1]} : vector<16x128xbf16> to vector<16x32xbf16>
    %61 = vector.extract_strided_slice %58 {offsets = [0, 0], sizes = [16, 32], strides = [1, 1]} : vector<16x128xbf16> to vector<16x32xbf16>
    %cst_27 = arith.constant dense<0.000000e+00> : vector<16x16xf32>
    %62 = tpu.matmul %59, %60, %cst_27 {dimension_numbers = #tpu.dot_dimension_numbers<[1], [1], [0], [0], [0, 0, 1, 0], [], []>} : vector<16x32xbf16>, vector<16x32xbf16>, vector<16x16xf32> -> vector<16x16xf32>
    %cst_28 = arith.constant dense<0xFF800000> : vector<16xf32>
    %63 = vector.multi_reduction <maximumf>, %62, %cst_28 [1] : vector<16x16xf32> to vector<16xf32>
    %64 = vector.shape_cast %63 : vector<16xf32> to vector<16x1xf32>
    %65 = vector.broadcast %64 : vector<16x1xf32> to vector<16x16xf32>
    %66 = arith.subf %62, %65 : vector<16x16xf32>
    %67 = math.exp %66 : vector<16x16xf32>
    %cst_29 = arith.constant dense<0.000000e+00> : vector<16xf32>
    %68 = vector.multi_reduction <add>, %67, %cst_29 [1] : vector<16x16xf32> to vector<16xf32>
    %69 = vector.shape_cast %68 : vector<16xf32> to vector<16x1xf32>
    %70 = tpu.reciprocal %69 {approx = true} : vector<16x1xf32> -> vector<16x1xf32>
    %71 = vector.broadcast %70 : vector<16x1xf32> to vector<16x16xf32>
    %72 = arith.mulf %67, %71 : vector<16x16xf32>
    %73 = arith.truncf %72 : vector<16x16xf32> to vector<16x16xbf16>
    %cst_30 = arith.constant dense<0.000000e+00> : vector<16x32xf32>
    %74 = tpu.matmul %73, %61, %cst_30 {dimension_numbers = #tpu.dot_dimension_numbers<[1], [0], [0], [1], [0, 0, 1, 1], [], []>} : vector<16x16xbf16>, vector<16x32xbf16>, vector<16x32xf32> -> vector<16x32xf32>
    %c0_31 = arith.constant 0 : index
    %c0_32 = arith.constant 0 : index
    %75 = vector.load %arg20[%c0_31, %c0_32] : memref<16x128xf32, #tpu.memory_space<vmem>>, vector<16x32xf32>
    tpu.vector_store %arg20[%c0_31, %c0_32], %74 {strides = array<i32>} : memref<16x128xf32, #tpu.memory_space<vmem>>, vector<16x32xf32>,
    %76 = vector.extract_strided_slice %50 {offsets = [0, 32], sizes = [16, 32], strides = [1, 1]} : vector<16x128xbf16> to vector<16x32xbf16>
    %77 = vector.extract_strided_slice %52 {offsets = [0, 32], sizes = [16, 32], strides = [1, 1]} : vector<16x128xbf16> to vector<16x32xbf16>
    %78 = vector.extract_strided_slice %58 {offsets = [0, 32], sizes = [16, 32], strides = [1, 1]} : vector<16x128xbf16> to vector<16x32xbf16>
    %cst_33 = arith.constant dense<0.000000e+00> : vector<16x16xf32>
    %79 = tpu.matmul %76, %77, %cst_33 {dimension_numbers = #tpu.dot_dimension_numbers<[1], [1], [0], [0], [0, 0, 1, 0], [], []>} : vector<16x32xbf16>, vector<16x32xbf16>, vector<16x16xf32> -> vector<16x16xf32>
    %cst_34 = arith.constant dense<0xFF800000> : vector<16xf32>
    %80 = vector.multi_reduction <maximumf>, %79, %cst_34 [1] : vector<16x16xf32> to vector<16xf32>
    %81 = vector.shape_cast %80 : vector<16xf32> to vector<16x1xf32>
    %82 = vector.broadcast %81 : vector<16x1xf32> to vector<16x16xf32>
    %83 = arith.subf %79, %82 : vector<16x16xf32>
    %84 = math.exp %83 : vector<16x16xf32>
    %cst_35 = arith.constant dense<0.000000e+00> : vector<16xf32>
    %85 = vector.multi_reduction <add>, %84, %cst_35 [1] : vector<16x16xf32> to vector<16xf32>
    %86 = vector.shape_cast %85 : vector<16xf32> to vector<16x1xf32>
    %87 = tpu.reciprocal %86 {approx = true} : vector<16x1xf32> -> vector<16x1xf32>
    %88 = vector.broadcast %87 : vector<16x1xf32> to vector<16x16xf32>
    %89 = arith.mulf %84, %88 : vector<16x16xf32>
    %90 = arith.truncf %89 : vector<16x16xf32> to vector<16x16xbf16>
    %cst_36 = arith.constant dense<0.000000e+00> : vector<16x32xf32>
    %91 = tpu.matmul %90, %78, %cst_36 {dimension_numbers = #tpu.dot_dimension_numbers<[1], [0], [0], [1], [0, 0, 1, 1], [], []>} : vector<16x16xbf16>, vector<16x32xbf16>, vector<16x32xf32> -> vector<16x32xf32>
    %c0_37 = arith.constant 0 : index
    %c32 = arith.constant 32 : index
    %92 = vector.load %arg20[%c0_37, %c32] : memref<16x128xf32, #tpu.memory_space<vmem>>, vector<16x32xf32>
    tpu.vector_store %arg20[%c0_37, %c32], %91 {strides = array<i32>} : memref<16x128xf32, #tpu.memory_space<vmem>>, vector<16x32xf32>,
    %93 = vector.extract_strided_slice %50 {offsets = [0, 64], sizes = [16, 32], strides = [1, 1]} : vector<16x128xbf16> to vector<16x32xbf16>
    %94 = vector.extract_strided_slice %52 {offsets = [0, 64], sizes = [16, 32], strides = [1, 1]} : vector<16x128xbf16> to vector<16x32xbf16>
    %95 = vector.extract_strided_slice %58 {offsets = [0, 64], sizes = [16, 32], strides = [1, 1]} : vector<16x128xbf16> to vector<16x32xbf16>
    %cst_38 = arith.constant dense<0.000000e+00> : vector<16x16xf32>
    %96 = tpu.matmul %93, %94, %cst_38 {dimension_numbers = #tpu.dot_dimension_numbers<[1], [1], [0], [0], [0, 0, 1, 0], [], []>} : vector<16x32xbf16>, vector<16x32xbf16>, vector<16x16xf32> -> vector<16x16xf32>
    %cst_39 = arith.constant dense<0xFF800000> : vector<16xf32>
    %97 = vector.multi_reduction <maximumf>, %96, %cst_39 [1] : vector<16x16xf32> to vector<16xf32>
    %98 = vector.shape_cast %97 : vector<16xf32> to vector<16x1xf32>
    %99 = vector.broadcast %98 : vector<16x1xf32> to vector<16x16xf32>
    %100 = arith.subf %96, %99 : vector<16x16xf32>
    %101 = math.exp %100 : vector<16x16xf32>
    %cst_40 = arith.constant dense<0.000000e+00> : vector<16xf32>
    %102 = vector.multi_reduction <add>, %101, %cst_40 [1] : vector<16x16xf32> to vector<16xf32>
    %103 = vector.shape_cast %102 : vector<16xf32> to vector<16x1xf32>
    %104 = tpu.reciprocal %103 {approx = true} : vector<16x1xf32> -> vector<16x1xf32>
    %105 = vector.broadcast %104 : vector<16x1xf32> to vector<16x16xf32>
    %106 = arith.mulf %101, %105 : vector<16x16xf32>
    %107 = arith.truncf %106 : vector<16x16xf32> to vector<16x16xbf16>
    %cst_41 = arith.constant dense<0.000000e+00> : vector<16x32xf32>
    %108 = tpu.matmul %107, %95, %cst_41 {dimension_numbers = #tpu.dot_dimension_numbers<[1], [0], [0], [1], [0, 0, 1, 1], [], []>} : vector<16x16xbf16>, vector<16x32xbf16>, vector<16x32xf32> -> vector<16x32xf32>
    %c0_42 = arith.constant 0 : index
    %c64 = arith.constant 64 : index
    %109 = vector.load %arg20[%c0_42, %c64] : memref<16x128xf32, #tpu.memory_space<vmem>>, vector<16x32xf32>
    tpu.vector_store %arg20[%c0_42, %c64], %108 {strides = array<i32>} : memref<16x128xf32, #tpu.memory_space<vmem>>, vector<16x32xf32>,
    %110 = vector.extract_strided_slice %50 {offsets = [0, 96], sizes = [16, 32], strides = [1, 1]} : vector<16x128xbf16> to vector<16x32xbf16>
    %111 = vector.extract_strided_slice %52 {offsets = [0, 96], sizes = [16, 32], strides = [1, 1]} : vector<16x128xbf16> to vector<16x32xbf16>
    %112 = vector.extract_strided_slice %58 {offsets = [0, 96], sizes = [16, 32], strides = [1, 1]} : vector<16x128xbf16> to vector<16x32xbf16>
    %cst_43 = arith.constant dense<0.000000e+00> : vector<16x16xf32>
    %113 = tpu.matmul %110, %111, %cst_43 {dimension_numbers = #tpu.dot_dimension_numbers<[1], [1], [0], [0], [0, 0, 1, 0], [], []>} : vector<16x32xbf16>, vector<16x32xbf16>, vector<16x16xf32> -> vector<16x16xf32>
    %cst_44 = arith.constant dense<0xFF800000> : vector<16xf32>
    %114 = vector.multi_reduction <maximumf>, %113, %cst_44 [1] : vector<16x16xf32> to vector<16xf32>
    %115 = vector.shape_cast %114 : vector<16xf32> to vector<16x1xf32>
    %116 = vector.broadcast %115 : vector<16x1xf32> to vector<16x16xf32>
    %117 = arith.subf %113, %116 : vector<16x16xf32>
    %118 = math.exp %117 : vector<16x16xf32>
    %cst_45 = arith.constant dense<0.000000e+00> : vector<16xf32>
    %119 = vector.multi_reduction <add>, %118, %cst_45 [1] : vector<16x16xf32> to vector<16xf32>
    %120 = vector.shape_cast %119 : vector<16xf32> to vector<16x1xf32>
    %121 = tpu.reciprocal %120 {approx = true} : vector<16x1xf32> -> vector<16x1xf32>
    %122 = vector.broadcast %121 : vector<16x1xf32> to vector<16x16xf32>
    %123 = arith.mulf %118, %122 : vector<16x16xf32>
    %124 = arith.truncf %123 : vector<16x16xf32> to vector<16x16xbf16>
    %cst_46 = arith.constant dense<0.000000e+00> : vector<16x32xf32>
    %125 = tpu.matmul %124, %112, %cst_46 {dimension_numbers = #tpu.dot_dimension_numbers<[1], [0], [0], [1], [0, 0, 1, 1], [], []>} : vector<16x16xbf16>, vector<16x32xbf16>, vector<16x32xf32> -> vector<16x32xf32>
    %c0_47 = arith.constant 0 : index
    %c96 = arith.constant 96 : index
    %126 = vector.load %arg20[%c0_47, %c96] : memref<16x128xf32, #tpu.memory_space<vmem>>, vector<16x32xf32>
    tpu.vector_store %arg20[%c0_47, %c96], %125 {strides = array<i32>} : memref<16x128xf32, #tpu.memory_space<vmem>>, vector<16x32xf32>,
    %c0_48 = arith.constant 0 : index
    %c0_49 = arith.constant 0 : index
    %127 = vector.load %arg20[%c0_48, %c0_49] : memref<16x128xf32, #tpu.memory_space<vmem>>, vector<16x128xf32>
    %128 = arith.truncf %127 : vector<16x128xf32> to vector<16x128xbf16>
    %c0_50 = arith.constant 0 : index
    %c0_51 = arith.constant 0 : index
    %129 = vector.load %arg11[%c0_50, %c0_51] : memref<128x128xbf16, #tpu.memory_space<vmem>>, vector<128x128xbf16>
    %cst_52 = arith.constant dense<0.000000e+00> : vector<16x128xf32>
    %130 = tpu.matmul %128, %129, %cst_52 {dimension_numbers = #tpu.dot_dimension_numbers<[1], [0], [0], [1], [0, 0, 1, 1], [], []>} : vector<16x128xbf16>, vector<128x128xbf16>, vector<16x128xf32> -> vector<16x128xf32>
    %c0_53 = arith.constant 0 : index
    %c0_54 = arith.constant 0 : index
    %131 = vector.load %arg12[%c0_53, %c0_54] : memref<1x128xf32, #tpu.memory_space<vmem>>, vector<1x128xf32>
    %132 = vector.broadcast %131 : vector<1x128xf32> to vector<16x128xf32>
    %133 = arith.addf %130, %132 : vector<16x128xf32>
    %134 = arith.addf %133, %1 : vector<16x128xf32>
    %cst_55 = arith.constant dense<0.000000e+00> : vector<16xf32>
    %135 = vector.multi_reduction <add>, %134, %cst_55 [1] : vector<16x128xf32> to vector<16xf32>
    %136 = vector.shape_cast %135 : vector<16xf32> to vector<16x1xf32>
    %cst_56 = arith.constant 1.280000e+02 : f32
    %137 = vector.broadcast %cst_56 : f32 to vector<16x1xf32>
    %138 = arith.divf %136, %137 : vector<16x1xf32>
    %139 = vector.broadcast %138 : vector<16x1xf32> to vector<16x128xf32>
    %140 = arith.subf %134, %139 : vector<16x128xf32>
    %141 = arith.mulf %140, %140 : vector<16x128xf32>
    %cst_57 = arith.constant dense<0.000000e+00> : vector<16xf32>
    %142 = vector.multi_reduction <add>, %141, %cst_57 [1] : vector<16x128xf32> to vector<16xf32>
    %143 = vector.shape_cast %142 : vector<16xf32> to vector<16x1xf32>
    %cst_58 = arith.constant 1.280000e+02 : f32
    %144 = vector.broadcast %cst_58 : f32 to vector<16x1xf32>
    %145 = arith.divf %143, %144 : vector<16x1xf32>
    %146 = vector.broadcast %138 : vector<16x1xf32> to vector<16x128xf32>
    %147 = arith.subf %134, %146 : vector<16x128xf32>
    %cst_59 = arith.constant 9.99999997E-7 : f32
    %148 = vector.broadcast %cst_59 : f32 to vector<16x1xf32>
    %149 = arith.addf %145, %148 : vector<16x1xf32>
    %150 = math.rsqrt %149 : vector<16x1xf32>
    %151 = vector.broadcast %150 : vector<16x1xf32> to vector<16x128xf32>
    %152 = arith.mulf %147, %151 : vector<16x128xf32>
    %c0_60 = arith.constant 0 : index
    %c0_61 = arith.constant 0 : index
    %153 = vector.load %arg13[%c0_60, %c0_61] : memref<1x128xf32, #tpu.memory_space<vmem>>, vector<1x128xf32>
    %154 = vector.broadcast %153 : vector<1x128xf32> to vector<16x128xf32>
    %155 = arith.mulf %152, %154 : vector<16x128xf32>
    %c0_62 = arith.constant 0 : index
    %c0_63 = arith.constant 0 : index
    %156 = vector.load %arg14[%c0_62, %c0_63] : memref<1x128xf32, #tpu.memory_space<vmem>>, vector<1x128xf32>
    %157 = vector.broadcast %156 : vector<1x128xf32> to vector<16x128xf32>
    %158 = arith.addf %155, %157 : vector<16x128xf32>
    %159 = arith.truncf %158 : vector<16x128xf32> to vector<16x128xbf16>
    %c0_64 = arith.constant 0 : index
    %c0_65 = arith.constant 0 : index
    %160 = vector.load %arg15[%c0_64, %c0_65] : memref<128x256xbf16, #tpu.memory_space<vmem>>, vector<128x256xbf16>
    %cst_66 = arith.constant dense<0.000000e+00> : vector<16x256xf32>
    %161 = tpu.matmul %159, %160, %cst_66 {dimension_numbers = #tpu.dot_dimension_numbers<[1], [0], [0], [1], [0, 0, 1, 1], [], []>} : vector<16x128xbf16>, vector<128x256xbf16>, vector<16x256xf32> -> vector<16x256xf32>
    %c0_67 = arith.constant 0 : index
    %c0_68 = arith.constant 0 : index
    %162 = vector.load %arg16[%c0_67, %c0_68] : memref<1x256xf32, #tpu.memory_space<vmem>>, vector<1x256xf32>
    %163 = vector.broadcast %162 : vector<1x256xf32> to vector<16x256xf32>
    %164 = arith.addf %161, %163 : vector<16x256xf32>
    %cst_69 = arith.constant 0.707106769 : f32
    %165 = vector.broadcast %cst_69 : f32 to vector<16x256xf32>
    %166 = arith.mulf %164, %165 : vector<16x256xf32>
    %167 = math.absf %166 : vector<16x256xf32>
    %cst_70 = arith.constant 0.327591091 : f32
    %168 = vector.broadcast %cst_70 : f32 to vector<16x256xf32>
    %169 = arith.mulf %168, %167 : vector<16x256xf32>
    %cst_71 = arith.constant 1.000000e+00 : f32
    %170 = vector.broadcast %cst_71 : f32 to vector<16x256xf32>
    %171 = arith.addf %170, %169 : vector<16x256xf32>
    %cst_72 = arith.constant 1.000000e+00 : f32
    %172 = vector.broadcast %cst_72 : f32 to vector<16x256xf32>
    %173 = arith.divf %172, %171 : vector<16x256xf32>
    %cst_73 = arith.constant 1.06140542 : f32
    %174 = vector.broadcast %cst_73 : f32 to vector<16x256xf32>
    %175 = arith.mulf %173, %174 : vector<16x256xf32>
    %cst_74 = arith.constant -1.45315206 : f32
    %176 = vector.broadcast %cst_74 : f32 to vector<16x256xf32>
    %177 = arith.addf %176, %175 : vector<16x256xf32>
    %178 = arith.mulf %173, %177 : vector<16x256xf32>
    %cst_75 = arith.constant 1.42141378 : f32
    %179 = vector.broadcast %cst_75 : f32 to vector<16x256xf32>
    %180 = arith.addf %179, %178 : vector<16x256xf32>
    %181 = arith.mulf %173, %180 : vector<16x256xf32>
    %cst_76 = arith.constant -0.284496725 : f32
    %182 = vector.broadcast %cst_76 : f32 to vector<16x256xf32>
    %183 = arith.addf %182, %181 : vector<16x256xf32>
    %184 = arith.mulf %173, %183 : vector<16x256xf32>
    %cst_77 = arith.constant 0.254829586 : f32
    %185 = vector.broadcast %cst_77 : f32 to vector<16x256xf32>
    %186 = arith.addf %185, %184 : vector<16x256xf32>
    %187 = arith.mulf %173, %186 : vector<16x256xf32>
    %cst_78 = arith.constant 0.000000e+00 : f32
    %188 = vector.broadcast %cst_78 : f32 to vector<16x256xf32>
    %189 = arith.subf %188, %167 : vector<16x256xf32>
    %190 = arith.mulf %189, %167 : vector<16x256xf32>
    %191 = math.exp %190 : vector<16x256xf32>
    %192 = arith.mulf %187, %191 : vector<16x256xf32>
    %cst_79 = arith.constant 1.000000e+00 : f32
    %193 = vector.broadcast %cst_79 : f32 to vector<16x256xf32>
    %194 = arith.subf %193, %192 : vector<16x256xf32>
    %cst_80 = arith.constant 0.000000e+00 : f32
    %195 = vector.broadcast %cst_80 : f32 to vector<16x256xf32>
    %196 = arith.cmpf oge, %166, %195 : vector<16x256xf32>
    %cst_81 = arith.constant 0.000000e+00 : f32
    %197 = vector.broadcast %cst_81 : f32 to vector<16x256xf32>
    %198 = arith.subf %197, %194 : vector<16x256xf32>
    %199 = arith.select %196, %194, %198 : vector<16x256xi1>, vector<16x256xf32>
    %cst_82 = arith.constant 5.000000e-01 : f32
    %200 = vector.broadcast %cst_82 : f32 to vector<16x256xf32>
    %201 = arith.mulf %200, %164 : vector<16x256xf32>
    %cst_83 = arith.constant 1.000000e+00 : f32
    %202 = vector.broadcast %cst_83 : f32 to vector<16x256xf32>
    %203 = arith.addf %202, %199 : vector<16x256xf32>
    %204 = arith.mulf %201, %203 : vector<16x256xf32>
    %205 = arith.truncf %204 : vector<16x256xf32> to vector<16x256xbf16>
    %c0_84 = arith.constant 0 : index
    %c0_85 = arith.constant 0 : index
    %206 = vector.load %arg17[%c0_84, %c0_85] : memref<256x128xbf16, #tpu.memory_space<vmem>>, vector<256x128xbf16>
    %cst_86 = arith.constant dense<0.000000e+00> : vector<16x128xf32>
    %207 = tpu.matmul %205, %206, %cst_86 {dimension_numbers = #tpu.dot_dimension_numbers<[1], [0], [0], [1], [0, 0, 1, 1], [], []>} : vector<16x256xbf16>, vector<256x128xbf16>, vector<16x128xf32> -> vector<16x128xf32>
    %c0_87 = arith.constant 0 : index
    %c0_88 = arith.constant 0 : index
    %208 = vector.load %arg18[%c0_87, %c0_88] : memref<1x128xf32, #tpu.memory_space<vmem>>, vector<1x128xf32>
    %209 = vector.broadcast %208 : vector<1x128xf32> to vector<16x128xf32>
    %210 = arith.addf %207, %209 : vector<16x128xf32>
    %211 = arith.addf %134, %210 : vector<16x128xf32>
    %c0_89 = arith.constant 0 : index
    %c0_90 = arith.constant 0 : index
    %c0_91 = arith.constant 0 : index
    %212 = vector.load %arg19[%c0_89, %c0_90, %c0_91] : memref<1x16x128xf32, #tpu.memory_space<vmem>>, vector<1x16x128xf32>
    %213 = vector.shape_cast %212 : vector<1x16x128xf32> to vector<16x128xf32>
    %214 = vector.shape_cast %211 : vector<16x128xf32> to vector<1x16x128xf32>
    tpu.vector_store %arg19[%c0_89, %c0_90, %c0_91], %214 {strides = array<i32>} : memref<1x16x128xf32, #tpu.memory_space<vmem>>, vector<1x16x128xf32>,
    return
  }
  func.func @transform_0(%arg0: i32) -> (i32, i32, i32) {
    %c0_i32 = arith.constant 0 : i32
    %c0_i32_0 = arith.constant 0 : i32
    %c0_i32_1 = arith.constant 0 : i32
    return %arg0, %c0_i32, %c0_i32_0 : i32, i32, i32
  }
  func.func @transform_1(%arg0: i32) -> (i32, i32) {
    %c0_i32 = arith.constant 0 : i32
    %c0_i32_0 = arith.constant 0 : i32
    %c0_i32_1 = arith.constant 0 : i32
    return %c0_i32, %c0_i32_0 : i32, i32
  }
  func.func @transform_2(%arg0: i32) -> (i32, i32) {
    %c0_i32 = arith.constant 0 : i32
    %c0_i32_0 = arith.constant 0 : i32
    %c0_i32_1 = arith.constant 0 : i32
    return %c0_i32, %c0_i32_0 : i32, i32
  }
  func.func @transform_3(%arg0: i32) -> (i32, i32) {
    %c0_i32 = arith.constant 0 : i32
    %c0_i32_0 = arith.constant 0 : i32
    %c0_i32_1 = arith.constant 0 : i32
    return %c0_i32, %c0_i32_0 : i32, i32
  }
  func.func @transform_4(%arg0: i32) -> (i32, i32) {
    %c0_i32 = arith.constant 0 : i32
    %c0_i32_0 = arith.constant 0 : i32
    %c0_i32_1 = arith.constant 0 : i32
    return %c0_i32, %c0_i32_0 : i32, i32
  }
  func.func @transform_5(%arg0: i32) -> (i32, i32) {
    %c0_i32 = arith.constant 0 : i32
    %c0_i32_0 = arith.constant 0 : i32
    %c0_i32_1 = arith.constant 0 : i32
    return %c0_i32, %c0_i32_0 : i32, i32
  }
  func.func @transform_6(%arg0: i32) -> (i32, i32) {
    %c0_i32 = arith.constant 0 : i32
    %c0_i32_0 = arith.constant 0 : i32
    %c0_i32_1 = arith.constant 0 : i32
    return %c0_i32, %c0_i32_0 : i32, i32
  }
  func.func @transform_7(%arg0: i32) -> (i32, i32) {
    %c0_i32 = arith.constant 0 : i32
    %c0_i32_0 = arith.constant 0 : i32
    %c0_i32_1 = arith.constant 0 : i32
    return %c0_i32, %c0_i32_0 : i32, i32
  }
  func.func @transform_8(%arg0: i32) -> (i32, i32) {
    %c0_i32 = arith.constant 0 : i32
    %c0_i32_0 = arith.constant 0 : i32
    %c0_i32_1 = arith.constant 0 : i32
    return %c0_i32, %c0_i32_0 : i32, i32
  }
  func.func @transform_9(%arg0: i32) -> (i32, i32) {
    %c0_i32 = arith.constant 0 : i32
    %c0_i32_0 = arith.constant 0 : i32
    %c0_i32_1 = arith.constant 0 : i32
    return %c0_i32, %c0_i32_0 : i32, i32
  }
  func.func @transform_10(%arg0: i32) -> (i32, i32) {
    %c0_i32 = arith.constant 0 : i32
    %c0_i32_0 = arith.constant 0 : i32
    %c0_i32_1 = arith.constant 0 : i32
    return %c0_i32, %c0_i32_0 : i32, i32
  }
  func.func @transform_11(%arg0: i32) -> (i32, i32) {
    %c0_i32 = arith.constant 0 : i32
    %c0_i32_0 = arith.constant 0 : i32
    %c0_i32_1 = arith.constant 0 : i32
    return %c0_i32, %c0_i32_0 : i32, i32
  }
  func.func @transform_12(%arg0: i32) -> (i32, i32) {
    %c0_i32 = arith.constant 0 : i32
    %c0_i32_0 = arith.constant 0 : i32
    %c0_i32_1 = arith.constant 0 : i32
    return %c0_i32, %c0_i32_0 : i32, i32
  }
  func.func @transform_13(%arg0: i32) -> (i32, i32) {
    %c0_i32 = arith.constant 0 : i32
    %c0_i32_0 = arith.constant 0 : i32
    %c0_i32_1 = arith.constant 0 : i32
    return %c0_i32, %c0_i32_0 : i32, i32
  }
  func.func @transform_14(%arg0: i32) -> (i32, i32) {
    %c0_i32 = arith.constant 0 : i32
    %c0_i32_0 = arith.constant 0 : i32
    %c0_i32_1 = arith.constant 0 : i32
    return %c0_i32, %c0_i32_0 : i32, i32
  }
  func.func @transform_15(%arg0: i32) -> (i32, i32) {
    %c0_i32 = arith.constant 0 : i32
    %c0_i32_0 = arith.constant 0 : i32
    %c0_i32_1 = arith.constant 0 : i32
    return %c0_i32, %c0_i32_0 : i32, i32
  }
  func.func @transform_16(%arg0: i32) -> (i32, i32) {
    %c0_i32 = arith.constant 0 : i32
    %c0_i32_0 = arith.constant 0 : i32
    %c0_i32_1 = arith.constant 0 : i32
    return %c0_i32, %c0_i32_0 : i32, i32
  }
  func.func @transform_17(%arg0: i32) -> (i32, i32) {
    %c0_i32 = arith.constant 0 : i32
    %c0_i32_0 = arith.constant 0 : i32
    %c0_i32_1 = arith.constant 0 : i32
    return %c0_i32, %c0_i32_0 : i32, i32
  }
  func.func @transform_18(%arg0: i32) -> (i32, i32, i32) {
    %c0_i32 = arith.constant 0 : i32
    %c0_i32_0 = arith.constant 0 : i32
    %c0_i32_1 = arith.constant 0 : i32
    return %arg0, %c0_i32, %c0_i32_0 : i32, i32, i32
  }
}

</mosaic_0001>

<llo_original>
// kernel: tpu_custom_call.1
$region0: #{tpu_custom_call.1}
  #allocation0 [shape = 'u32[]', space=smem, size = 0x4, offset = 0x4, fixed_abs, tag = 'smem constant byte address 0x4 - core index']
  #allocation1 [shape = 'u32[144,128]{1,0:T(1,128)}', space=vmem, size = 0x12000, scoped, tag = 'internal scratch']
  #allocation2 [shape = 'f32[16,128]{1,0:T(8,128)}', space=vmem, size = 0x2000, scoped, tag = 'scratch operand']
  %s0 = inlined_call_operand.hbm [shape: f32[2,16,128], index: 0, kind: input, shape index: {}]
  %s1 = inlined_call_operand.hbm [shape: f32[16,128], index: 1, kind: input, shape index: {}]
  %s2 = inlined_call_operand.hbm [shape: f32[16,128], index: 2, kind: input, shape index: {}]
  %s3 = inlined_call_operand.hbm [shape: f32[16,128], index: 3, kind: input, shape index: {}]
  %s4 = inlined_call_operand.vmem [shape: f32[1,128], index: 4, kind: input, shape index: {}]
  %s5 = inlined_call_operand.vmem [shape: f32[1,128], index: 5, kind: input, shape index: {}]
  %s6 = inlined_call_operand.hbm [shape: bf16[128,256], index: 6, kind: input, shape index: {}]
  %s7 = inlined_call_operand.vmem [shape: f32[1,256], index: 7, kind: input, shape index: {}]
  %s8 = inlined_call_operand.hbm [shape: bf16[128,128], index: 8, kind: input, shape index: {}]
  %s9 = inlined_call_operand.vmem [shape: f32[1,128], index: 9, kind: input, shape index: {}]
  %s10 = inlined_call_operand.hbm [shape: bf16[128,128], index: 10, kind: input, shape index: {}]
  %s11 = inlined_call_operand.vmem [shape: f32[1,128], index: 11, kind: input, shape index: {}]
  %s12 = inlined_call_operand.vmem [shape: f32[1,128], index: 12, kind: input, shape index: {}]
  %s13 = inlined_call_operand.vmem [shape: f32[1,128], index: 13, kind: input, shape index: {}]
  %s14 = inlined_call_operand.hbm [shape: bf16[128,256], index: 14, kind: input, shape index: {}]
  %s15 = inlined_call_operand.vmem [shape: f32[1,256], index: 15, kind: input, shape index: {}]
  %s16 = inlined_call_operand.hbm [shape: bf16[256,128], index: 16, kind: input, shape index: {}]
  %s17 = inlined_call_operand.vmem [shape: f32[1,128], index: 17, kind: input, shape index: {}]
  %s18 = inlined_call_operand.hbm [shape: f32[2,16,128], index: 18, kind: output, shape index: {}]
  %s19 = sld [smem:[#allocation0]]
  $region141: #{tpu_custom_call.1} parent=0
    _
  %s21 = ssub.s32 1, %s19
  %s22 = scalar_select 0, %s21, %s19
  $region1: #{tpu_custom_call.1} parent=0
    #allocation3 [shape = 'u8[16384]{0}', space=vmem, size = 0x4000, scoped, tag = 'input window, operand 0']
    #allocation4 [shape = 's32[2]{0}', space=sflag, size = 0x8, scoped, tag = 'scoped memory for tpu_custom_call.1']
    #allocation5 [shape = 's32[2]{0}', space=sflag, size = 0x8, scoped, tag = 'scoped memory for tpu_custom_call.1']
    #allocation6 [shape = 'u8[8192]{0}', space=vmem, size = 0x2000, scoped, tag = 'input window, operand 1, single buffered']
    #allocation7 [shape = 's32[1]{0}', space=sflag, size = 0x4, scoped, tag = 'scoped memory for tpu_custom_call.1']
    #allocation8 [shape = 'u8[8192]{0}', space=vmem, size = 0x2000, scoped, tag = 'input window, operand 2, single buffered']
    #allocation9 [shape = 'u8[8192]{0}', space=vmem, size = 0x2000, scoped, tag = 'input window, operand 3, single buffered']
    #allocation10 [shape = 's32[1]{0}', space=sflag, size = 0x4, scoped, tag = 'scoped memory for tpu_custom_call.1']
    #allocation11 [shape = 'u8[65536]{0}', space=vmem, size = 0x10000, scoped, tag = 'input window, operand 6, single buffered']
    #allocation12 [shape = 'u8[32768]{0}', space=vmem, size = 0x8000, scoped, tag = 'input window, operand 8, single buffered']
    #allocation13 [shape = 's32[1]{0}', space=sflag, size = 0x4, scoped, tag = 'scoped memory for tpu_custom_call.1']
    #allocation14 [shape = 'u8[32768]{0}', space=vmem, size = 0x8000, scoped, tag = 'input window, operand 10, single buffered']
    #allocation15 [shape = 'u8[65536]{0}', space=vmem, size = 0x10000, scoped, tag = 'input window, operand 14, single buffered']
    #allocation16 [shape = 's32[1]{0}', space=sflag, size = 0x4, scoped, tag = 'scoped memory for tpu_custom_call.1']
    #allocation17 [shape = 'u8[65536]{0}', space=vmem, size = 0x10000, scoped, tag = 'input window, operand 16, single buffered']
    #allocation18 [shape = 'u8[16384]{0}', space=vmem, size = 0x4000, scoped, tag = 'output window, operand 0']
    %23 = vsyncpa [#allocation4], 0
    %s24 = scalar_lea.sflag [#allocation4], 1
    %25 = vsyncpa %s24, 0
    %26 = vsyncpa [#allocation7], 0
    %27 = vsyncpa [#allocation10], 0
    %28 = vsyncpa [#allocation13], 0
    %29 = vsyncpa [#allocation16], 0
    %30 = vsyncpa [#allocation5], 0
    %s31 = scalar_lea.sflag [#allocation5], 1
    %32 = vsyncpa %s31, 0
    loop: start=0, step=1, limit=4
    $region2: #{tpu_custom_call.1} parent=1 // loop_pre_header
      _
    $region3: #{tpu_custom_call.1} parent=1 // loop_header
      %s34 = sphi 0, %s38
      %p35 = scmp.ge.s32.totalorder %s34, 4
      %s44 = sphi 0, %s46
      %s47 = sphi 0, %s44
      %s48 = sphi 0, %s47
      %s64 = sphi 0, %s48
      %s68 = sphi 0, %s68
      %s70 = sphi 0, %s68
      %s71 = sphi 0, %s70
      %s85 = sphi 0, %s71
      %s89 = sphi 0, %s89
      %s91 = sphi 0, %s89
      %s92 = sphi 0, %s91
      %s106 = sphi 0, %s92
      %s110 = sphi 0, %s110
      %s112 = sphi 0, %s110
      %s113 = sphi 0, %s112
      %s127 = sphi 0, %s113
      %s131 = sphi 0, %s131
      %s133 = sphi 0, %s131
      %s134 = sphi 0, %s133
      %s148 = sphi 0, %s134
      %s152 = sphi 0, %s152
      %s154 = sphi 0, %s152
      %s155 = sphi 0, %s154
      %s169 = sphi 0, %s155
      %s173 = sphi 0, %s173
      %s175 = sphi 0, %s173
      %s176 = sphi 0, %s175
      %s190 = sphi 0, %s176
      %s194 = sphi 0, %s194
      %s196 = sphi 0, %s194
      %s197 = sphi 0, %s196
      %s211 = sphi 0, %s197
      %s215 = sphi 0, %s215
      %s217 = sphi 0, %s215
      %s218 = sphi 0, %s217
      %s232 = sphi 0, %s218
      %s236 = sphi 0, %s236
      %s238 = sphi 0, %s236
      %s239 = sphi 0, %s238
      %s253 = sphi 0, %s239
      %s257 = sphi 0, %s257
      %s259 = sphi 0, %s257
      %s260 = sphi 0, %s259
      %s274 = sphi 0, %s260
      %s278 = sphi 0, %s278
      %s280 = sphi 0, %s278
      %s281 = sphi 0, %s280
      %s295 = sphi 0, %s281
      %s299 = sphi 0, %s299
      %s301 = sphi 0, %s299
      %s302 = sphi 0, %s301
      %s316 = sphi 0, %s302
      %s320 = sphi 0, %s320
      %s322 = sphi 0, %s320
      %s323 = sphi 0, %s322
      %s337 = sphi 0, %s323
      %s341 = sphi 0, %s341
      %s343 = sphi 0, %s341
      %s344 = sphi 0, %s343
      %s358 = sphi 0, %s344
      %s362 = sphi 0, %s362
      %s364 = sphi 0, %s362
      %s365 = sphi 0, %s364
      %s379 = sphi 0, %s365
      %s383 = sphi 0, %s383
      %s385 = sphi 0, %s383
      %s386 = sphi 0, %s385
      %s400 = sphi 0, %s386
      %s404 = sphi 0, %s404
      %s406 = sphi 0, %s404
      %s407 = sphi 0, %s406
      %s421 = sphi 0, %s407
      %s427 = sphi 0, %s429
      %s430 = sphi 0, %s427
      %s431 = sphi 0, %s430
      %s447 = sphi 0, %s431
    $region4: #{tpu_custom_call.1} parent=1 // loop_header_branch
      %37 = sbr.rel (%p35) target = $region8
    $region5: #{tpu_custom_call.1} parent=1 // loop_body
      %s39 = ssub.s32 %s34, 1
      %s40 = ssub.s32 %s34, 2
      %s41 = sadd.s32 %s34, 1
      %s42 = ssub.s32 %s34, %s41
      %p43 = scmp.eq.s32.totalorder %s42, 0
      %s45 = sadd.s32 %s44, 1
      %s46 = scalar_select %p43, %s44, %s45
      %p49 = pneg %p43
      %p50 = scmp.eq.s32.totalorder %s34, 1
      %p51 = por %p49, %p50
      %p52 = scmp.ne.s32.totalorder %s44, %s47
      %p53 = scmp.eq.s32.totalorder %s34, 0
      %p54 = por %p52, %p53
      %p55 = scmp.ne.s32.totalorder %s44, %s47
      %p56 = scmp.eq.s32.totalorder %s39, 1
      %p57 = por %p55, %p56
      %p58 = scmp.ne.s32.totalorder %s47, %s48
      %p59 = scmp.eq.s32.totalorder %s39, 0
      %p60 = por %p58, %p59
      %p61 = scmp.ne.s32.totalorder %s47, %s48
      %p62 = scmp.eq.s32.totalorder %s40, 1
      %p63 = por %p61, %p62
      %p65 = scmp.ne.s32.totalorder %s48, %s64
      %p66 = scmp.eq.s32.totalorder %s40, 0
      %p67 = por %p65, %p66
      %s69 = sadd.s32 %s68, 1
      %p72 = scmp.eq.s32.totalorder %s34, 1
      %p73 = scmp.ne.s32.totalorder %s68, %s70
      %p74 = scmp.eq.s32.totalorder %s34, 0
      %p75 = por %p73, %p74
      %p76 = scmp.ne.s32.totalorder %s68, %s70
      %p77 = scmp.eq.s32.totalorder %s39, 1
      %p78 = por %p76, %p77
      %p79 = scmp.ne.s32.totalorder %s70, %s71
      %p80 = scmp.eq.s32.totalorder %s39, 0
      %p81 = por %p79, %p80
      %p82 = scmp.ne.s32.totalorder %s70, %s71
      %p83 = scmp.eq.s32.totalorder %s40, 1
      %p84 = por %p82, %p83
      %p86 = scmp.ne.s32.totalorder %s71, %s85
      %p87 = scmp.eq.s32.totalorder %s40, 0
      %p88 = por %p86, %p87
      %s90 = sadd.s32 %s89, 1
      %p93 = scmp.eq.s32.totalorder %s34, 1
      %p94 = scmp.ne.s32.totalorder %s89, %s91
      %p95 = scmp.eq.s32.totalorder %s34, 0
      %p96 = por %p94, %p95
      %p97 = scmp.ne.s32.totalorder %s89, %s91
      %p98 = scmp.eq.s32.totalorder %s39, 1
      %p99 = por %p97, %p98
      %p100 = scmp.ne.s32.totalorder %s91, %s92
      %p101 = scmp.eq.s32.totalorder %s39, 0
      %p102 = por %p100, %p101
      %p103 = scmp.ne.s32.totalorder %s91, %s92
      %p104 = scmp.eq.s32.totalorder %s40, 1
      %p105 = por %p103, %p104
      %p107 = scmp.ne.s32.totalorder %s92, %s106
      %p108 = scmp.eq.s32.totalorder %s40, 0
      %p109 = por %p107, %p108
      %s111 = sadd.s32 %s110, 1
      %p114 = scmp.eq.s32.totalorder %s34, 1
      %p115 = scmp.ne.s32.totalorder %s110, %s112
      %p116 = scmp.eq.s32.totalorder %s34, 0
      %p117 = por %p115, %p116
      %p118 = scmp.ne.s32.totalorder %s110, %s112
      %p119 = scmp.eq.s32.totalorder %s39, 1
      %p120 = por %p118, %p119
      %p121 = scmp.ne.s32.totalorder %s112, %s113
      %p122 = scmp.eq.s32.totalorder %s39, 0
      %p123 = por %p121, %p122
      %p124 = scmp.ne.s32.totalorder %s112, %s113
      %p125 = scmp.eq.s32.totalorder %s40, 1
      %p126 = por %p124, %p125
      %p128 = scmp.ne.s32.totalorder %s113, %s127
      %p129 = scmp.eq.s32.totalorder %s40, 0
      %p130 = por %p128, %p129
      %s132 = sadd.s32 %s131, 1
      %p135 = scmp.eq.s32.totalorder %s34, 1
      %p136 = scmp.ne.s32.totalorder %s131, %s133
      %p137 = scmp.eq.s32.totalorder %s34, 0
      %p138 = por %p136, %p137
      %p139 = scmp.ne.s32.totalorder %s131, %s133
      %p140 = scmp.eq.s32.totalorder %s39, 1
      %p141 = por %p139, %p140
      %p142 = scmp.ne.s32.totalorder %s133, %s134
      %p143 = scmp.eq.s32.totalorder %s39, 0
      %p144 = por %p142, %p143
      %p145 = scmp.ne.s32.totalorder %s133, %s134
      %p146 = scmp.eq.s32.totalorder %s40, 1
      %p147 = por %p145, %p146
      %p149 = scmp.ne.s32.totalorder %s134, %s148
      %p150 = scmp.eq.s32.totalorder %s40, 0
      %p151 = por %p149, %p150
      %s153 = sadd.s32 %s152, 1
      %p156 = scmp.eq.s32.totalorder %s34, 1
      %p157 = scmp.ne.s32.totalorder %s152, %s154
      %p158 = scmp.eq.s32.totalorder %s34, 0
      %p159 = por %p157, %p158
      %p160 = scmp.ne.s32.totalorder %s152, %s154
      %p161 = scmp.eq.s32.totalorder %s39, 1
      %p162 = por %p160, %p161
      %p163 = scmp.ne.s32.totalorder %s154, %s155
      %p164 = scmp.eq.s32.totalorder %s39, 0
      %p165 = por %p163, %p164
      %p166 = scmp.ne.s32.totalorder %s154, %s155
      %p167 = scmp.eq.s32.totalorder %s40, 1
      %p168 = por %p166, %p167
      %p170 = scmp.ne.s32.totalorder %s155, %s169
      %p171 = scmp.eq.s32.totalorder %s40, 0
      %p172 = por %p170, %p171
      %s174 = sadd.s32 %s173, 1
      %p177 = scmp.eq.s32.totalorder %s34, 1
      %p178 = scmp.ne.s32.totalorder %s173, %s175
      %p179 = scmp.eq.s32.totalorder %s34, 0
      %p180 = por %p178, %p179
      %p181 = scmp.ne.s32.totalorder %s173, %s175
      %p182 = scmp.eq.s32.totalorder %s39, 1
      %p183 = por %p181, %p182
      %p184 = scmp.ne.s32.totalorder %s175, %s176
      %p185 = scmp.eq.s32.totalorder %s39, 0
      %p186 = por %p184, %p185
      %p187 = scmp.ne.s32.totalorder %s175, %s176
      %p188 = scmp.eq.s32.totalorder %s40, 1
      %p189 = por %p187, %p188
      %p191 = scmp.ne.s32.totalorder %s176, %s190
      %p192 = scmp.eq.s32.totalorder %s40, 0
      %p193 = por %p191, %p192
      %s195 = sadd.s32 %s194, 1
      %p198 = scmp.eq.s32.totalorder %s34, 1
      %p199 = scmp.ne.s32.totalorder %s194, %s196
      %p200 = scmp.eq.s32.totalorder %s34, 0
      %p201 = por %p199, %p200
      %p202 = scmp.ne.s32.totalorder %s194, %s196
      %p203 = scmp.eq.s32.totalorder %s39, 1
      %p204 = por %p202, %p203
      %p205 = scmp.ne.s32.totalorder %s196, %s197
      %p206 = scmp.eq.s32.totalorder %s39, 0
      %p207 = por %p205, %p206
      %p208 = scmp.ne.s32.totalorder %s196, %s197
      %p209 = scmp.eq.s32.totalorder %s40, 1
      %p210 = por %p208, %p209
      %p212 = scmp.ne.s32.totalorder %s197, %s211
      %p213 = scmp.eq.s32.totalorder %s40, 0
      %p214 = por %p212, %p213
      %s216 = sadd.s32 %s215, 1
      %p219 = scmp.eq.s32.totalorder %s34, 1
      %p220 = scmp.ne.s32.totalorder %s215, %s217
      %p221 = scmp.eq.s32.totalorder %s34, 0
      %p222 = por %p220, %p221
      %p223 = scmp.ne.s32.totalorder %s215, %s217
      %p224 = scmp.eq.s32.totalorder %s39, 1
      %p225 = por %p223, %p224
      %p226 = scmp.ne.s32.totalorder %s217, %s218
      %p227 = scmp.eq.s32.totalorder %s39, 0
      %p228 = por %p226, %p227
      %p229 = scmp.ne.s32.totalorder %s217, %s218
      %p230 = scmp.eq.s32.totalorder %s40, 1
      %p231 = por %p229, %p230
      %p233 = scmp.ne.s32.totalorder %s218, %s232
      %p234 = scmp.eq.s32.totalorder %s40, 0
      %p235 = por %p233, %p234
      %s237 = sadd.s32 %s236, 1
      %p240 = scmp.eq.s32.totalorder %s34, 1
      %p241 = scmp.ne.s32.totalorder %s236, %s238
      %p242 = scmp.eq.s32.totalorder %s34, 0
      %p243 = por %p241, %p242
      %p244 = scmp.ne.s32.totalorder %s236, %s238
      %p245 = scmp.eq.s32.totalorder %s39, 1
      %p246 = por %p244, %p245
      %p247 = scmp.ne.s32.totalorder %s238, %s239
      %p248 = scmp.eq.s32.totalorder %s39, 0
      %p249 = por %p247, %p248
      %p250 = scmp.ne.s32.totalorder %s238, %s239
      %p251 = scmp.eq.s32.totalorder %s40, 1
      %p252 = por %p250, %p251
      %p254 = scmp.ne.s32.totalorder %s239, %s253
      %p255 = scmp.eq.s32.totalorder %s40, 0
      %p256 = por %p254, %p255
      %s258 = sadd.s32 %s257, 1
      %p261 = scmp.eq.s32.totalorder %s34, 1
      %p262 = scmp.ne.s32.totalorder %s257, %s259
      %p263 = scmp.eq.s32.totalorder %s34, 0
      %p264 = por %p262, %p263
      %p265 = scmp.ne.s32.totalorder %s257, %s259
      %p266 = scmp.eq.s32.totalorder %s39, 1
      %p267 = por %p265, %p266
      %p268 = scmp.ne.s32.totalorder %s259, %s260
      %p269 = scmp.eq.s32.totalorder %s39, 0
      %p270 = por %p268, %p269
      %p271 = scmp.ne.s32.totalorder %s259, %s260
      %p272 = scmp.eq.s32.totalorder %s40, 1
      %p273 = por %p271, %p272
      %p275 = scmp.ne.s32.totalorder %s260, %s274
      %p276 = scmp.eq.s32.totalorder %s40, 0
      %p277 = por %p275, %p276
      %s279 = sadd.s32 %s278, 1
      %p282 = scmp.eq.s32.totalorder %s34, 1
      %p283 = scmp.ne.s32.totalorder %s278, %s280
      %p284 = scmp.eq.s32.totalorder %s34, 0
      %p285 = por %p283, %p284
      %p286 = scmp.ne.s32.totalorder %s278, %s280
      %p287 = scmp.eq.s32.totalorder %s39, 1
      %p288 = por %p286, %p287
      %p289 = scmp.ne.s32.totalorder %s280, %s281
      %p290 = scmp.eq.s32.totalorder %s39, 0
      %p291 = por %p289, %p290
      %p292 = scmp.ne.s32.totalorder %s280, %s281
      %p293 = scmp.eq.s32.totalorder %s40, 1
      %p294 = por %p292, %p293
      %p296 = scmp.ne.s32.totalorder %s281, %s295
      %p297 = scmp.eq.s32.totalorder %s40, 0
      %p298 = por %p296, %p297
      %s300 = sadd.s32 %s299, 1
      %p303 = scmp.eq.s32.totalorder %s34, 1
      %p304 = scmp.ne.s32.totalorder %s299, %s301
      %p305 = scmp.eq.s32.totalorder %s34, 0
      %p306 = por %p304, %p305
      %p307 = scmp.ne.s32.totalorder %s299, %s301
      %p308 = scmp.eq.s32.totalorder %s39, 1
      %p309 = por %p307, %p308
      %p310 = scmp.ne.s32.totalorder %s301, %s302
      %p311 = scmp.eq.s32.totalorder %s39, 0
      %p312 = por %p310, %p311
      %p313 = scmp.ne.s32.totalorder %s301, %s302
      %p314 = scmp.eq.s32.totalorder %s40, 1
      %p315 = por %p313, %p314
      %p317 = scmp.ne.s32.totalorder %s302, %s316
      %p318 = scmp.eq.s32.totalorder %s40, 0
      %p319 = por %p317, %p318
      %s321 = sadd.s32 %s320, 1
      %p324 = scmp.eq.s32.totalorder %s34, 1
      %p325 = scmp.ne.s32.totalorder %s320, %s322
      %p326 = scmp.eq.s32.totalorder %s34, 0
      %p327 = por %p325, %p326
      %p328 = scmp.ne.s32.totalorder %s320, %s322
      %p329 = scmp.eq.s32.totalorder %s39, 1
      %p330 = por %p328, %p329
      %p331 = scmp.ne.s32.totalorder %s322, %s323
      %p332 = scmp.eq.s32.totalorder %s39, 0
      %p333 = por %p331, %p332
      %p334 = scmp.ne.s32.totalorder %s322, %s323
      %p335 = scmp.eq.s32.totalorder %s40, 1
      %p336 = por %p334, %p335
      %p338 = scmp.ne.s32.totalorder %s323, %s337
      %p339 = scmp.eq.s32.totalorder %s40, 0
      %p340 = por %p338, %p339
      %s342 = sadd.s32 %s341, 1
      %p345 = scmp.eq.s32.totalorder %s34, 1
      %p346 = scmp.ne.s32.totalorder %s341, %s343
      %p347 = scmp.eq.s32.totalorder %s34, 0
      %p348 = por %p346, %p347
      %p349 = scmp.ne.s32.totalorder %s341, %s343
      %p350 = scmp.eq.s32.totalorder %s39, 1
      %p351 = por %p349, %p350
      %p352 = scmp.ne.s32.totalorder %s343, %s344
      %p353 = scmp.eq.s32.totalorder %s39, 0
      %p354 = por %p352, %p353
      %p355 = scmp.ne.s32.totalorder %s343, %s344
      %p356 = scmp.eq.s32.totalorder %s40, 1
      %p357 = por %p355, %p356
      %p359 = scmp.ne.s32.totalorder %s344, %s358
      %p360 = scmp.eq.s32.totalorder %s40, 0
      %p361 = por %p359, %p360
      %s363 = sadd.s32 %s362, 1
      %p366 = scmp.eq.s32.totalorder %s34, 1
      %p367 = scmp.ne.s32.totalorder %s362, %s364
      %p368 = scmp.eq.s32.totalorder %s34, 0
      %p369 = por %p367, %p368
      %p370 = scmp.ne.s32.totalorder %s362, %s364
      %p371 = scmp.eq.s32.totalorder %s39, 1
      %p372 = por %p370, %p371
      %p373 = scmp.ne.s32.totalorder %s364, %s365
      %p374 = scmp.eq.s32.totalorder %s39, 0
      %p375 = por %p373, %p374
      %p376 = scmp.ne.s32.totalorder %s364, %s365
      %p377 = scmp.eq.s32.totalorder %s40, 1
      %p378 = por %p376, %p377
      %p380 = scmp.ne.s32.totalorder %s365, %s379
      %p381 = scmp.eq.s32.totalorder %s40, 0
      %p382 = por %p380, %p381
      %s384 = sadd.s32 %s383, 1
      %p387 = scmp.eq.s32.totalorder %s34, 1
      %p388 = scmp.ne.s32.totalorder %s383, %s385
      %p389 = scmp.eq.s32.totalorder %s34, 0
      %p390 = por %p388, %p389
      %p391 = scmp.ne.s32.totalorder %s383, %s385
      %p392 = scmp.eq.s32.totalorder %s39, 1
      %p393 = por %p391, %p392
      %p394 = scmp.ne.s32.totalorder %s385, %s386
      %p395 = scmp.eq.s32.totalorder %s39, 0
      %p396 = por %p394, %p395
      %p397 = scmp.ne.s32.totalorder %s385, %s386
      %p398 = scmp.eq.s32.totalorder %s40, 1
      %p399 = por %p397, %p398
      %p401 = scmp.ne.s32.totalorder %s386, %s400
      %p402 = scmp.eq.s32.totalorder %s40, 0
      %p403 = por %p401, %p402
      %s405 = sadd.s32 %s404, 1
      %p408 = scmp.eq.s32.totalorder %s34, 1
      %p409 = scmp.ne.s32.totalorder %s404, %s406
      %p410 = scmp.eq.s32.totalorder %s34, 0
      %p411 = por %p409, %p410
      %p412 = scmp.ne.s32.totalorder %s404, %s406
      %p413 = scmp.eq.s32.totalorder %s39, 1
      %p414 = por %p412, %p413
      %p415 = scmp.ne.s32.totalorder %s406, %s407
      %p416 = scmp.eq.s32.totalorder %s39, 0
      %p417 = por %p415, %p416
      %p418 = scmp.ne.s32.totalorder %s406, %s407
      %p419 = scmp.eq.s32.totalorder %s40, 1
      %p420 = por %p418, %p419
      %p422 = scmp.ne.s32.totalorder %s407, %s421
      %p423 = scmp.eq.s32.totalorder %s40, 0
      %p424 = por %p422, %p423
      %s425 = ssub.s32 %s34, %s41
      %p426 = scmp.eq.s32.totalorder %s425, 0
      %s428 = sadd.s32 %s427, 1
      %s429 = scalar_select %p426, %s427, %s428
      %p432 = pneg %p426
      %p433 = scmp.eq.s32.totalorder %s34, 1
      %p434 = por %p432, %p433
      %p435 = scmp.ne.s32.totalorder %s427, %s430
      %p436 = scmp.eq.s32.totalorder %s34, 0
      %p437 = por %p435, %p436
      %p438 = scmp.ne.s32.totalorder %s427, %s430
      %p439 = scmp.eq.s32.totalorder %s39, 1
      %p440 = por %p438, %p439
      %p441 = scmp.ne.s32.totalorder %s430, %s431
      %p442 = scmp.eq.s32.totalorder %s39, 0
      %p443 = por %p441, %p442
      %p444 = scmp.ne.s32.totalorder %s430, %s431
      %p445 = scmp.eq.s32.totalorder %s40, 1
      %p446 = por %p444, %p445
      %p448 = scmp.ne.s32.totalorder %s431, %s447
      %p449 = scmp.eq.s32.totalorder %s40, 0
      %p450 = por %p448, %p449
      %p451 = scmp.le.s32.totalorder 1, %s34
      %p452 = scmp.lt.s32.totalorder %s34, 3
      %p453 = pnand %p451, %p452
      %p454 = pneg %p453
      // Predicated region
      $region9: #{tpu_custom_call.1} parent=5 // pred_check
        _
      $region10: #{tpu_custom_call.1} parent=5 // pred_check_branch
        %456 = sbr.rel (%p453) target = $region12
      $region11: #{tpu_custom_call.1} parent=5 // pred_region
        %s457 = ssub.s32 %s34, 1
        // Predicated region
        $region13: #{tpu_custom_call.1} parent=11 // pred_check
          %p458 = pneg %p81
        $region14: #{tpu_custom_call.1} parent=11 // pred_check_branch
          %460 = sbr.rel (%p458) target = $region16
        $region15: #{tpu_custom_call.1} parent=11 // pred_region
          %s462 = ssub.s32 256, 256
          %463 = vsyncadd [#allocation7], %s462
          %s464 = sshll.u32 [#allocation6], 4
          %s465 = int_to_ptr.vmem [resolvable:$true] %s464
          %470 = dma.hbm_to_vmem [thread:$0]  %s1, 256, %s465, [#allocation7], 128, 128, 8
        $region16: #{tpu_custom_call.1} parent=11 // pred_fallthru
          _
        // Predicated region
        $region17: #{tpu_custom_call.1} parent=11 // pred_check
          %p471 = pneg %p102
        $region18: #{tpu_custom_call.1} parent=11 // pred_check_branch
          %473 = sbr.rel (%p471) target = $region20
        $region19: #{tpu_custom_call.1} parent=11 // pred_region
          %s475 = ssub.s32 256, 256
          %476 = vsyncadd [#allocation7], %s475
          %s477 = sshll.u32 [#allocation8], 4
          %s478 = int_to_ptr.vmem [resolvable:$true] %s477
          %483 = dma.hbm_to_vmem [thread:$0]  %s2, 256, %s478, [#allocation7], 128, 128, 8
        $region20: #{tpu_custom_call.1} parent=11 // pred_fallthru
          _
        // Predicated region
        $region21: #{tpu_custom_call.1} parent=11 // pred_check
          %p484 = pneg %p123
        $region22: #{tpu_custom_call.1} parent=11 // pred_check_branch
          %486 = sbr.rel (%p484) target = $region24
        $region23: #{tpu_custom_call.1} parent=11 // pred_region
          %s488 = ssub.s32 256, 256
          %489 = vsyncadd [#allocation10], %s488
          %s490 = sshll.u32 [#allocation9], 4
          %s491 = int_to_ptr.vmem [resolvable:$true] %s490
          %496 = dma.hbm_to_vmem [thread:$0]  %s3, 256, %s491, [#allocation10], 128, 128, 8
        $region24: #{tpu_custom_call.1} parent=11 // pred_fallthru
          _
        // Predicated region
        $region25: #{tpu_custom_call.1} parent=11 // pred_check
          %p497 = pneg %p144
        $region26: #{tpu_custom_call.1} parent=11 // pred_check_branch
          %499 = sbr.rel (%p497) target = $region28
        $region27: #{tpu_custom_call.1} parent=11 // pred_region
          _
        $region28: #{tpu_custom_call.1} parent=11 // pred_fallthru
          _
        // Predicated region
        $region29: #{tpu_custom_call.1} parent=11 // pred_check
          %p500 = pneg %p165
        $region30: #{tpu_custom_call.1} parent=11 // pred_check_branch
          %502 = sbr.rel (%p500) target = $region32
        $region31: #{tpu_custom_call.1} parent=11 // pred_region
          _
        $region32: #{tpu_custom_call.1} parent=11 // pred_fallthru
          _
        // Predicated region
        $region33: #{tpu_custom_call.1} parent=11 // pred_check
          %p503 = pneg %p186
        $region34: #{tpu_custom_call.1} parent=11 // pred_check_branch
          %505 = sbr.rel (%p503) target = $region36
        $region35: #{tpu_custom_call.1} parent=11 // pred_region
          %s507 = ssub.s32 2048, 2048
          %508 = vsyncadd [#allocation10], %s507
          %s509 = sshll.u32 [#allocation11], 4
          %s510 = int_to_ptr.vmem [resolvable:$true] %s509
          %515 = dma.hbm_to_vmem [thread:$0]  %s6, 2048, %s510, [#allocation10], 128, 128, 8
        $region36: #{tpu_custom_call.1} parent=11 // pred_fallthru
          _
        // Predicated region
        $region37: #{tpu_custom_call.1} parent=11 // pred_check
          %p516 = pneg %p207
        $region38: #{tpu_custom_call.1} parent=11 // pred_check_branch
          %518 = sbr.rel (%p516) target = $region40
        $region39: #{tpu_custom_call.1} parent=11 // pred_region
          _
        $region40: #{tpu_custom_call.1} parent=11 // pred_fallthru
          _
        // Predicated region
        $region41: #{tpu_custom_call.1} parent=11 // pred_check
          %p519 = pneg %p228
        $region42: #{tpu_custom_call.1} parent=11 // pred_check_branch
          %521 = sbr.rel (%p519) target = $region44
        $region43: #{tpu_custom_call.1} parent=11 // pred_region
          %s523 = ssub.s32 1024, 1024
          %524 = vsyncadd [#allocation13], %s523
          %s525 = sshll.u32 [#allocation12], 4
          %s526 = int_to_ptr.vmem [resolvable:$true] %s525
          %531 = dma.hbm_to_vmem [thread:$0]  %s8, 1024, %s526, [#allocation13], 64, 64, 4
        $region44: #{tpu_custom_call.1} parent=11 // pred_fallthru
          _
        // Predicated region
        $region45: #{tpu_custom_call.1} parent=11 // pred_check
          %p532 = pneg %p249
        $region46: #{tpu_custom_call.1} parent=11 // pred_check_branch
          %534 = sbr.rel (%p532) target = $region48
        $region47: #{tpu_custom_call.1} parent=11 // pred_region
          _
        $region48: #{tpu_custom_call.1} parent=11 // pred_fallthru
          _
        // Predicated region
        $region49: #{tpu_custom_call.1} parent=11 // pred_check
          %p535 = pneg %p270
        $region50: #{tpu_custom_call.1} parent=11 // pred_check_branch
          %537 = sbr.rel (%p535) target = $region52
        $region51: #{tpu_custom_call.1} parent=11 // pred_region
          %s539 = ssub.s32 1024, 1024
          %540 = vsyncadd [#allocation13], %s539
          %s541 = sshll.u32 [#allocation14], 4
          %s542 = int_to_ptr.vmem [resolvable:$true] %s541
          %547 = dma.hbm_to_vmem [thread:$0]  %s10, 1024, %s542, [#allocation13], 64, 64, 4
        $region52: #{tpu_custom_call.1} parent=11 // pred_fallthru
          _
        // Predicated region
        $region53: #{tpu_custom_call.1} parent=11 // pred_check
          %p548 = pneg %p291
        $region54: #{tpu_custom_call.1} parent=11 // pred_check_branch
          %550 = sbr.rel (%p548) target = $region56
        $region55: #{tpu_custom_call.1} parent=11 // pred_region
          _
        $region56: #{tpu_custom_call.1} parent=11 // pred_fallthru
          _
        // Predicated region
        $region57: #{tpu_custom_call.1} parent=11 // pred_check
          %p551 = pneg %p312
        $region58: #{tpu_custom_call.1} parent=11 // pred_check_branch
          %553 = sbr.rel (%p551) target = $region60
        $region59: #{tpu_custom_call.1} parent=11 // pred_region
          _
        $region60: #{tpu_custom_call.1} parent=11 // pred_fallthru
          _
        // Predicated region
        $region61: #{tpu_custom_call.1} parent=11 // pred_check
          %p554 = pneg %p333
        $region62: #{tpu_custom_call.1} parent=11 // pred_check_branch
          %556 = sbr.rel (%p554) target = $region64
        $region63: #{tpu_custom_call.1} parent=11 // pred_region
          _
        $region64: #{tpu_custom_call.1} parent=11 // pred_fallthru
          _
        // Predicated region
        $region65: #{tpu_custom_call.1} parent=11 // pred_check
          %p557 = pneg %p354
        $region66: #{tpu_custom_call.1} parent=11 // pred_check_branch
          %559 = sbr.rel (%p557) target = $region68
        $region67: #{tpu_custom_call.1} parent=11 // pred_region
          %s561 = ssub.s32 2048, 2048
          %562 = vsyncadd [#allocation16], %s561
          %s563 = sshll.u32 [#allocation15], 4
          %s564 = int_to_ptr.vmem [resolvable:$true] %s563
          %569 = dma.hbm_to_vmem [thread:$0]  %s14, 2048, %s564, [#allocation16], 128, 128, 8
        $region68: #{tpu_custom_call.1} parent=11 // pred_fallthru
          _
        // Predicated region
        $region69: #{tpu_custom_call.1} parent=11 // pred_check
          %p570 = pneg %p375
        $region70: #{tpu_custom_call.1} parent=11 // pred_check_branch
          %572 = sbr.rel (%p570) target = $region72
        $region71: #{tpu_custom_call.1} parent=11 // pred_region
          _
        $region72: #{tpu_custom_call.1} parent=11 // pred_fallthru
          _
        // Predicated region
        $region73: #{tpu_custom_call.1} parent=11 // pred_check
          %p573 = pneg %p396
        $region74: #{tpu_custom_call.1} parent=11 // pred_check_branch
          %575 = sbr.rel (%p573) target = $region76
        $region75: #{tpu_custom_call.1} parent=11 // pred_region
          %s577 = ssub.s32 2048, 2048
          %578 = vsyncadd [#allocation16], %s577
          %s579 = sshll.u32 [#allocation17], 4
          %s580 = int_to_ptr.vmem [resolvable:$true] %s579
          %585 = dma.hbm_to_vmem [thread:$0]  %s16, 2048, %s580, [#allocation16], 64, 64, 4
        $region76: #{tpu_custom_call.1} parent=11 // pred_fallthru
          _
        // Predicated region
        $region77: #{tpu_custom_call.1} parent=11 // pred_check
          %p586 = pneg %p417
        $region78: #{tpu_custom_call.1} parent=11 // pred_check_branch
          %588 = sbr.rel (%p586) target = $region80
        $region79: #{tpu_custom_call.1} parent=11 // pred_region
          _
        $region80: #{tpu_custom_call.1} parent=11 // pred_fallthru
          _
      $region12: #{tpu_custom_call.1} parent=5 // pred_fallthru
        _
      %p589 = scmp.lt.s32.totalorder %s34, 2
      // Predicated region
      $region81: #{tpu_custom_call.1} parent=5 // pred_check
        %p590 = pneg %p589
      $region82: #{tpu_custom_call.1} parent=5 // pred_check_branch
        %592 = sbr.rel (%p590) target = $region84
      $region83: #{tpu_custom_call.1} parent=5 // pred_region
        // Predicated region
        $region85: #{tpu_custom_call.1} parent=83 // pred_check
          %p593 = pneg %p54
        $region86: #{tpu_custom_call.1} parent=83 // pred_check_branch
          %595 = sbr.rel (%p593) target = $region88
        $region87: #{tpu_custom_call.1} parent=83 // pred_region
          %s596 = sand.u32 %s44, 1
          %s597 = scalar_lea.sflag [#allocation4], %s596
          %s598 = sand.u32 %s44, 1
          %s599 = smul.addr %s598, 16
          %s600 = scalar_lea.vmem [#allocation3], %s599
          %s602 = ssub.s32 256, 256
          %603 = vsyncadd %s597, %s602
          %s604 = smul.addr %s34, 2
          %s605 = smul.addr %s604, 128
          %s606 = scalar_lea.hbm %s0, %s605
          %s607 = sshll.u32 %s600, 4
          %s608 = int_to_ptr.vmem [resolvable:$true] %s607
          %613 = dma.hbm_to_vmem [thread:$0]  %s606, 256, %s608, %s597, 128, 128, 8
        $region88: #{tpu_custom_call.1} parent=83 // pred_fallthru
          _
      $region84: #{tpu_custom_call.1} parent=5 // pred_fallthru
        _
      %p614 = scmp.le.s32.totalorder 1, %s34
      %p615 = scmp.lt.s32.totalorder %s34, 3
      %p616 = pnand %p614, %p615
      %p617 = pneg %p616
      // Predicated region
      $region89: #{tpu_custom_call.1} parent=5 // pred_check
        _
      $region90: #{tpu_custom_call.1} parent=5 // pred_check_branch
        %619 = sbr.rel (%p616) target = $region92
      $region91: #{tpu_custom_call.1} parent=5 // pred_region
        %s620 = ssub.s32 %s34, 1
        %s621 = sand.u32 %s47, 1
        %s622 = scalar_lea.sflag [#allocation4], %s621
        %s623 = sand.u32 %s47, 1
        %s624 = smul.addr %s623, 16
        %s625 = scalar_lea.vmem [#allocation3], %s624
        // Predicated region
        $region93: #{tpu_custom_call.1} parent=91 // pred_check
          %p626 = pneg %p60
        $region94: #{tpu_custom_call.1} parent=91 // pred_check_branch
          %628 = sbr.rel (%p626) target = $region96
        $region95: #{tpu_custom_call.1} parent=91 // pred_region
          %629 = dma.done %s622, 256
        $region96: #{tpu_custom_call.1} parent=91 // pred_fallthru
          _
        // Predicated region
        $region97: #{tpu_custom_call.1} parent=91 // pred_check
          %p630 = pneg %p81
        $region98: #{tpu_custom_call.1} parent=91 // pred_check_branch
          %632 = sbr.rel (%p630) target = $region100
        $region99: #{tpu_custom_call.1} parent=91 // pred_region
          %633 = dma.done [#allocation7], 256
        $region100: #{tpu_custom_call.1} parent=91 // pred_fallthru
          _
        // Predicated region
        $region101: #{tpu_custom_call.1} parent=91 // pred_check
          %p634 = pneg %p102
        $region102: #{tpu_custom_call.1} parent=91 // pred_check_branch
          %636 = sbr.rel (%p634) target = $region104
        $region103: #{tpu_custom_call.1} parent=91 // pred_region
          %637 = dma.done [#allocation7], 256
        $region104: #{tpu_custom_call.1} parent=91 // pred_fallthru
          _
        // Predicated region
        $region105: #{tpu_custom_call.1} parent=91 // pred_check
          %p638 = pneg %p123
        $region106: #{tpu_custom_call.1} parent=91 // pred_check_branch
          %640 = sbr.rel (%p638) target = $region108
        $region107: #{tpu_custom_call.1} parent=91 // pred_region
          %641 = dma.done [#allocation10], 256
        $region108: #{tpu_custom_call.1} parent=91 // pred_fallthru
          _
        // Predicated region
        $region109: #{tpu_custom_call.1} parent=91 // pred_check
          %p642 = pneg %p186
        $region110: #{tpu_custom_call.1} parent=91 // pred_check_branch
          %644 = sbr.rel (%p642) target = $region112
        $region111: #{tpu_custom_call.1} parent=91 // pred_region
          %645 = dma.done [#allocation10], 2048
        $region112: #{tpu_custom_call.1} parent=91 // pred_fallthru
          _
        // Predicated region
        $region113: #{tpu_custom_call.1} parent=91 // pred_check
          %p646 = pneg %p228
        $region114: #{tpu_custom_call.1} parent=91 // pred_check_branch
          %648 = sbr.rel (%p646) target = $region116
        $region115: #{tpu_custom_call.1} parent=91 // pred_region
          %649 = dma.done [#allocation13], 1024
        $region116: #{tpu_custom_call.1} parent=91 // pred_fallthru
          _
        // Predicated region
        $region117: #{tpu_custom_call.1} parent=91 // pred_check
          %p650 = pneg %p270
        $region118: #{tpu_custom_call.1} parent=91 // pred_check_branch
          %652 = sbr.rel (%p650) target = $region120
        $region119: #{tpu_custom_call.1} parent=91 // pred_region
          %653 = dma.done [#allocation13], 1024
        $region120: #{tpu_custom_call.1} parent=91 // pred_fallthru
          _
        // Predicated region
        $region121: #{tpu_custom_call.1} parent=91 // pred_check
          %p654 = pneg %p354
        $region122: #{tpu_custom_call.1} parent=91 // pred_check_branch
          %656 = sbr.rel (%p654) target = $region124
        $region123: #{tpu_custom_call.1} parent=91 // pred_region
          %657 = dma.done [#allocation16], 2048
        $region124: #{tpu_custom_call.1} parent=91 // pred_fallthru
          _
        // Predicated region
        $region125: #{tpu_custom_call.1} parent=91 // pred_check
          %p658 = pneg %p396
        $region126: #{tpu_custom_call.1} parent=91 // pred_check_branch
          %660 = sbr.rel (%p658) target = $region128
        $region127: #{tpu_custom_call.1} parent=91 // pred_region
          %661 = dma.done [#allocation16], 2048
        $region128: #{tpu_custom_call.1} parent=91 // pred_fallthru
          _
        %s662 = sand.u32 %s47, 1
        %s663 = scalar_lea.sflag [#allocation4], %s662
        %s664 = sand.u32 %s47, 1
        %s665 = smul.addr %s664, 16
        %s666 = scalar_lea.vmem [#allocation3], %s665
        %p667 = pneg %p60
        %p668 = pneg %p57
        %p669 = pneg %p81
        %p670 = pneg %p78
        %p671 = pneg %p102
        %p672 = pneg %p99
        %p673 = pneg %p123
        %p674 = pneg %p120
        %p675 = pneg %p144
        %p676 = pneg %p141
        %p677 = pneg %p165
        %p678 = pneg %p162
        %p679 = pneg %p186
        %p680 = pneg %p183
        %p681 = pneg %p207
        %p682 = pneg %p204
        %p683 = pneg %p228
        %p684 = pneg %p225
        %p685 = pneg %p249
        %p686 = pneg %p246
        %p687 = pneg %p270
        %p688 = pneg %p267
        %p689 = pneg %p291
        %p690 = pneg %p288
        %p691 = pneg %p312
        %p692 = pneg %p309
        %p693 = pneg %p333
        %p694 = pneg %p330
        %p695 = pneg %p354
        %p696 = pneg %p351
        %p697 = pneg %p375
        %p698 = pneg %p372
        %p699 = pneg %p396
        %p700 = pneg %p393
        %p701 = pneg %p417
        %p702 = pneg %p414
        %p703 = pneg %p443
        %p704 = pneg %p440
        %s705 = sand.u32 %s430, 1
        %s706 = scalar_lea.sflag [#allocation5], %s705
        %s707 = sand.u32 %s430, 1
        %s708 = smul.addr %s707, 16
        %s709 = scalar_lea.vmem [#allocation18], %s708
        %v711 = vld [vmem:[%s625] sm:$0xff]
        %v712 = vld [vmem:[%s625 + $0x8] sm:$0xff]
        %713 = vadd.xlane.f32.xlu0 %v711
        %v714 = vpop.xlane.xlu0 %713
        %715 = vadd.xlane.f32.xlu0 %v712
        %v716 = vpop.xlane.xlu0 %715
        %v717 = vrcp.pop 128.0
        %v718 = vmul.f32 %v714, %v717
        %v719 = vmul.f32 %v716, %v717
        %v720 = vsub.f32 %v711, %v718
        %v721 = vsub.f32 %v712, %v719
        %v722 = vmul.f32 %v720, %v720
        %v723 = vmul.f32 %v721, %v721
        %724 = vadd.xlane.f32.xlu0 %v722
        %v725 = vpop.xlane.xlu0 %724
        %726 = vadd.xlane.f32.xlu0 %v723
        %v727 = vpop.xlane.xlu0 %726
        %v728 = vmul.f32 %v725, %v717
        %v729 = vmul.f32 %v727, %v717
        %v730 = vadd.f32 %v728, 1e-06
        %v731 = vadd.f32 %v729, 1e-06
        %v732 = vrsqrt.pop %v730
        %v733 = vrsqrt.pop %v731
        %v734 = vmul.f32 %v720, %v732
        %v735 = vmul.f32 %v721, %v733
        %v736 = vld [vmem:[%s4] sm:$0x1]
        %v738 = vlaneseq
        %v739 = vshrl.u32 %v738, 7
        %v740 = vsub.s32 0, %v739
        %v741 = vrot.slane %v736, %v740
        %v743 = vmul.f32 %v734, %v741
        %v744 = vmul.f32 %v735, %v741
        %v745 = vld [vmem:[%s5] sm:$0x1]
        %v747 = vlaneseq
        %v748 = vshrl.u32 %v747, 7
        %v749 = vsub.s32 0, %v748
        %v750 = vrot.slane %v745, %v749
        %v752 = vadd.f32 %v743, %v750
        %v753 = vadd.f32 %v744, %v750
        %756 = vrot.lane.b32.xlu0 %v752, 127
        %v757 = vpop.permute.xlu0 %756
        %758 = vrot.lane.b32.xlu0 %v753, 127
        %v759 = vpop.permute.xlu0 %758
        %762 = vrot.lane.b32.xlu0 %v752, 1
        %v763 = vpop.permute.xlu0 %762
        %764 = vrot.lane.b32.xlu0 %v753, 1
        %v765 = vpop.permute.xlu0 %764
        %v768 = vld [vmem:[#allocation6] sm:$0xff]
        %v769 = vld [vmem:[#allocation6 + $0x8] sm:$0xff]
        %v770 = vmul.f32 %v752, %v768
        %v771 = vmul.f32 %v753, %v769
        %v772 = vld [vmem:[#allocation8] sm:$0xff]
        %v773 = vld [vmem:[#allocation8 + $0x8] sm:$0xff]
        %v774 = vmul.f32 %v757, %v772
        %v775 = vmul.f32 %v759, %v773
        %v776 = vadd.f32 %v770, %v774
        %v777 = vadd.f32 %v771, %v775
        %v778 = vld [vmem:[#allocation9] sm:$0xff]
        %v779 = vld [vmem:[#allocation9 + $0x8] sm:$0xff]
        %v780 = vmul.f32 %v763, %v778
        %v781 = vmul.f32 %v765, %v779
        %v782 = vadd.f32 %v776, %v780
        %v783 = vadd.f32 %v777, %v781
        %v784 = vpack.c.bf16 %v783, %v782
        %v785 = vpack.c.bf16 %v753, %v752
        %v786 = vld [vmem:[#allocation11] sm:$0xff]
        %v787 = vld [vmem:[#allocation11 + $0x8] sm:$0xff]
        %v788 = vld [vmem:[#allocation11 + $0x10] sm:$0xff]
        %v789 = vld [vmem:[#allocation11 + $0x18] sm:$0xff]
        %v790 = vld [vmem:[#allocation11 + $0x20] sm:$0xff]
        %v791 = vld [vmem:[#allocation11 + $0x28] sm:$0xff]
        %v792 = vld [vmem:[#allocation11 + $0x30] sm:$0xff]
        %v793 = vld [vmem:[#allocation11 + $0x38] sm:$0xff]
        %v794 = vld [vmem:[#allocation11 + $0x40] sm:$0xff]
        %v795 = vld [vmem:[#allocation11 + $0x48] sm:$0xff]
        %v796 = vld [vmem:[#allocation11 + $0x50] sm:$0xff]
        %v797 = vld [vmem:[#allocation11 + $0x58] sm:$0xff]
        %v798 = vld [vmem:[#allocation11 + $0x60] sm:$0xff]
        %v799 = vld [vmem:[#allocation11 + $0x68] sm:$0xff]
        %v800 = vld [vmem:[#allocation11 + $0x70] sm:$0xff]
        %v801 = vld [vmem:[#allocation11 + $0x78] sm:$0xff]
        %v802 = vld [vmem:[%s7] sm:$0x3]
        %v804 = vlaneseq
        %v805 = vshrl.u32 %v804, 7
        %v806 = vsub.s32 0, %v805
        %v807 = vrot.slane %v802, %v806
        %v808 = vlaneseq
        %v809 = vshrl.u32 %v808, 7
        %v810 = vsub.s32 1, %v809
        %v811 = vrot.slane %v802, %v810
        %v830 = vunpack.c.l.b16 %v786
        %v831 = vunpack.c.h.b16 %v786
        %v832 = vunpack.c.l.b16 %v787
        %v833 = vunpack.c.h.b16 %v787
        %v834 = vunpack.c.l.b16 %v788
        %v835 = vunpack.c.h.b16 %v788
        %v836 = vunpack.c.l.b16 %v789
        %v837 = vunpack.c.h.b16 %v789
        %v838 = vunpack.c.l.b16 %v790
        %v839 = vunpack.c.h.b16 %v790
        %v840 = vunpack.c.l.b16 %v791
        %v841 = vunpack.c.h.b16 %v791
        %v842 = vunpack.c.l.b16 %v792
        %v843 = vunpack.c.h.b16 %v792
        %v844 = vunpack.c.l.b16 %v793
        %v845 = vunpack.c.h.b16 %v793
        %v846 = vunpack.c.l.b16 %v794
        %v847 = vunpack.c.h.b16 %v794
        %v848 = vunpack.c.l.b16 %v795
        %v849 = vunpack.c.h.b16 %v795
        %v850 = vunpack.c.l.b16 %v796
        %v851 = vunpack.c.h.b16 %v796
        %v852 = vunpack.c.l.b16 %v797
        %v853 = vunpack.c.h.b16 %v797
        %v854 = vunpack.c.l.b16 %v798
        %v855 = vunpack.c.h.b16 %v798
        %v856 = vunpack.c.l.b16 %v799
        %v857 = vunpack.c.h.b16 %v799
        %v858 = vunpack.c.l.b16 %v800
        %v859 = vunpack.c.h.b16 %v800
        %v860 = vunpack.c.l.b16 %v801
        %v861 = vunpack.c.h.b16 %v801
        %v862 = vpack.c.b16 %v832, %v830
        %v863 = vpack.c.b16 %v833, %v831
        %v864 = vpack.c.b16 %v836, %v834
        %v865 = vpack.c.b16 %v837, %v835
        %v866 = vpack.c.b16 %v840, %v838
        %v867 = vpack.c.b16 %v841, %v839
        %v868 = vpack.c.b16 %v844, %v842
        %v869 = vpack.c.b16 %v845, %v843
        %v870 = vpack.c.b16 %v848, %v846
        %v871 = vpack.c.b16 %v849, %v847
        %v872 = vpack.c.b16 %v852, %v850
        %v873 = vpack.c.b16 %v853, %v851
        %v874 = vpack.c.b16 %v856, %v854
        %v875 = vpack.c.b16 %v857, %v855
        %v876 = vpack.c.b16 %v860, %v858
        %v877 = vpack.c.b16 %v861, %v859
        %894 = vmatprep.subr.bf16.mxu0 %v863
        %895 = vmatpush1.bf16.msra.mxu0 %v862
        %896 = vmatprep.subr.bf16.mxu0 %v865
        %897 = vmatpush1.bf16.msra.mxu0 %v864
        %898 = vmatprep.subr.bf16.mxu0 %v867
        %899 = vmatpush1.bf16.msra.mxu0 %v866
        %900 = vmatprep.subr.bf16.mxu0 %v869
        %901 = vmatpush1.bf16.msra.mxu0 %v868
        %902 = vmatprep.subr.bf16.mxu0 %v871
        %903 = vmatpush1.bf16.msra.mxu0 %v870
        %904 = vmatprep.subr.bf16.mxu0 %v873
        %905 = vmatpush1.bf16.msra.mxu0 %v872
        %906 = vmatprep.subr.bf16.mxu0 %v875
        %907 = vmatpush1.bf16.msra.mxu0 %v874
        %908 = vmatprep.subr.bf16.mxu0 %v877
        %909 = vmatpush1.bf16.msra.mxu0 %v876
        %910 = vmatprep.subr.bf16.mxu0 0
        %911 = vmatpush1.bf16.msra.mxu0 0
        %912 = vmatprep.subr.bf16.mxu0 0
        %913 = vmatpush1.bf16.msra.mxu0 0
        %914 = vmatprep.subr.bf16.mxu0 0
        %915 = vmatpush1.bf16.msra.mxu0 0
        %916 = vmatprep.subr.bf16.mxu0 0
        %917 = vmatpush1.bf16.msra.mxu0 0
        %918 = vmatprep.subr.bf16.mxu0 0
        %919 = vmatpush1.bf16.msra.mxu0 0
        %920 = vmatprep.subr.bf16.mxu0 0
        %921 = vmatpush1.bf16.msra.mxu0 0
        %922 = vmatprep.subr.bf16.mxu0 0
        %923 = vmatpush1.bf16.msra.mxu0 0
        %924 = vmatprep.subr.bf16.mxu0 0
        %925 = vmatpush1.bf16.msra.mxu0 0
        %926 = vmatprep.mubr.bf16.mxu0 0
        %927 = vmatmul.mubr.bf16.gmra.mrb[0].mxu0 %v784
        %v928 = vpop.f32.mrb[0].mxu0
        %v929 = vadd.f32 %v807, %v928
        %v930 = vpop.f32.mrb[0].mxu0
        %v931 = vadd.f32 %v811, %v930
        %v932 = vpop.f32.mrb[0].mxu0
        %v933 = vadd.f32 %v807, %v932
        %v934 = vpop.f32.mrb[0].mxu0
        %v935 = vadd.f32 %v811, %v934
        %936 = vdwg.mxu0
        %v937 = vmul.f32 %v929, 0.17677669
        %v938 = vmul.f32 %v933, 0.17677669
        %v939 = vpack.c.bf16 %v938, %v937
        %v940 = vpack.c.bf16 %v935, %v931
        %v941 = vld [vmem:[#allocation12] sm:$0xf]
        %v942 = vld [vmem:[#allocation12 + $0x4] sm:$0xf]
        %v943 = vld [vmem:[#allocation12 + $0x8] sm:$0xf]
        %v944 = vld [vmem:[#allocation12 + $0xc] sm:$0xf]
        %v945 = vld [vmem:[#allocation12 + $0x10] sm:$0xf]
        %v946 = vld [vmem:[#allocation12 + $0x14] sm:$0xf]
        %v947 = vld [vmem:[#allocation12 + $0x18] sm:$0xf]
        %v948 = vld [vmem:[#allocation12 + $0x1c] sm:$0xf]
        %v949 = vld [vmem:[#allocation12 + $0x20] sm:$0xf]
        %v950 = vld [vmem:[#allocation12 + $0x24] sm:$0xf]
        %v951 = vld [vmem:[#allocation12 + $0x28] sm:$0xf]
        %v952 = vld [vmem:[#allocation12 + $0x2c] sm:$0xf]
        %v953 = vld [vmem:[#allocation12 + $0x30] sm:$0xf]
        %v954 = vld [vmem:[#allocation12 + $0x34] sm:$0xf]
        %v955 = vld [vmem:[#allocation12 + $0x38] sm:$0xf]
        %v956 = vld [vmem:[#allocation12 + $0x3c] sm:$0xf]
        %v957 = vld [vmem:[%s9] sm:$0x1]
        %v959 = vlaneseq
        %v960 = vshrl.u32 %v959, 7
        %v961 = vsub.s32 0, %v960
        %v962 = vrot.slane %v957, %v961
        %v980 = vunpack.c.l.b16 %v941
        %v981 = vunpack.c.l.b16 %v942
        %v982 = vunpack.c.l.b16 %v943
        %v983 = vunpack.c.l.b16 %v944
        %v984 = vunpack.c.l.b16 %v945
        %v985 = vunpack.c.l.b16 %v946
        %v986 = vunpack.c.l.b16 %v947
        %v987 = vunpack.c.l.b16 %v948
        %v988 = vunpack.c.l.b16 %v949
        %v989 = vunpack.c.l.b16 %v950
        %v990 = vunpack.c.l.b16 %v951
        %v991 = vunpack.c.l.b16 %v952
        %v992 = vunpack.c.l.b16 %v953
        %v993 = vunpack.c.l.b16 %v954
        %v994 = vunpack.c.l.b16 %v955
        %v995 = vunpack.c.l.b16 %v956
        %v996 = vpack.c.b16 %v981, %v980
        %v997 = vpack.c.b16 %v983, %v982
        %v998 = vpack.c.b16 %v985, %v984
        %v999 = vpack.c.b16 %v987, %v986
        %v1000 = vpack.c.b16 %v989, %v988
        %v1001 = vpack.c.b16 %v991, %v990
        %v1002 = vpack.c.b16 %v993, %v992
        %v1003 = vpack.c.b16 %v995, %v994
        %1012 = vmatprep.subr.bf16.mxu0 0
        %1013 = vmatpush1.bf16.msra.mxu0 %v996
        %1014 = vmatprep.subr.bf16.mxu0 0
        %1015 = vmatpush1.bf16.msra.mxu0 %v997
        %1016 = vmatprep.subr.bf16.mxu0 0
        %1017 = vmatpush1.bf16.msra.mxu0 %v998
        %1018 = vmatprep.subr.bf16.mxu0 0
        %1019 = vmatpush1.bf16.msra.mxu0 %v999
        %1020 = vmatprep.subr.bf16.mxu0 0
        %1021 = vmatpush1.bf16.msra.mxu0 %v1000
        %1022 = vmatprep.subr.bf16.mxu0 0
        %1023 = vmatpush1.bf16.msra.mxu0 %v1001
        %1024 = vmatprep.subr.bf16.mxu0 0
        %1025 = vmatpush1.bf16.msra.mxu0 %v1002
        %1026 = vmatprep.subr.bf16.mxu0 0
        %1027 = vmatpush1.bf16.msra.mxu0 %v1003
        %1028 = vmatprep.subr.bf16.mxu0 0
        %1029 = vmatpush1.bf16.msra.mxu0 0
        %1030 = vmatprep.subr.bf16.mxu0 0
        %1031 = vmatpush1.bf16.msra.mxu0 0
        %1032 = vmatprep.subr.bf16.mxu0 0
        %1033 = vmatpush1.bf16.msra.mxu0 0
        %1034 = vmatprep.subr.bf16.mxu0 0
        %1035 = vmatpush1.bf16.msra.mxu0 0
        %1036 = vmatprep.subr.bf16.mxu0 0
        %1037 = vmatpush1.bf16.msra.mxu0 0
        %1038 = vmatprep.subr.bf16.mxu0 0
        %1039 = vmatpush1.bf16.msra.mxu0 0
        %1040 = vmatprep.subr.bf16.mxu0 0
        %1041 = vmatpush1.bf16.msra.mxu0 0
        %1042 = vmatprep.subr.bf16.mxu0 0
        %1043 = vmatpush1.bf16.msra.mxu0 0
        %1044 = vmatprep.mubr.bf16.mxu0 0
        %1045 = vmatmul.mubr.bf16.gmra.mrb[0].mxu0 %v785
        %v1046 = vpop.f32.mrb[0].mxu0
        %v1047 = vadd.f32 %v962, %v1046
        %v1048 = vpop.f32.mrb[0].mxu0
        %v1049 = vpop.f32.mrb[0].mxu0
        %v1050 = vadd.f32 %v962, %v1049
        %v1051 = vpop.f32.mrb[0].mxu0
        %1052 = vdwg.mxu0
        %v1053 = vpack.c.bf16 %v1050, %v1047
        %vm1054 = vcmask 261120
        %v1056 = vsel %vm1054, %v939, 0
        %v1059 = vsel %vm1054, %v940, 0
        %1061 = vmatprep.subr.bf16.mxu0 0
        %1062 = vmatpush1.bf16.xpose.msra.mxu0 %v1059
        %1063 = vmatprep.subr.bf16.mxu0 0
        %1064 = vmatpush1.bf16.xpose.msra.mxu0 0
        %1065 = vmatprep.subr.bf16.mxu0 0
        %1066 = vmatpush1.bf16.xpose.msra.mxu0 0
        %1067 = vmatprep.subr.bf16.mxu0 0
        %1068 = vmatpush1.bf16.xpose.msra.mxu0 0
        %1069 = vmatprep.subr.bf16.mxu0 0
        %1070 = vmatpush1.bf16.xpose.msra.mxu0 0
        %1071 = vmatprep.subr.bf16.mxu0 0
        %1072 = vmatpush1.bf16.xpose.msra.mxu0 0
        %1073 = vmatprep.subr.bf16.mxu0 0
        %1074 = vmatpush1.bf16.xpose.msra.mxu0 0
        %1075 = vmatprep.subr.bf16.mxu0 0
        %1076 = vmatpush1.bf16.xpose.msra.mxu0 0
        %1077 = vmatprep.subr.bf16.mxu0 0
        %1078 = vmatpush1.bf16.xpose.msra.mxu0 0
        %1079 = vmatprep.subr.bf16.mxu0 0
        %1080 = vmatpush1.bf16.xpose.msra.mxu0 0
        %1081 = vmatprep.subr.bf16.mxu0 0
        %1082 = vmatpush1.bf16.xpose.msra.mxu0 0
        %1083 = vmatprep.subr.bf16.mxu0 0
        %1084 = vmatpush1.bf16.xpose.msra.mxu0 0
        %1085 = vmatprep.subr.bf16.mxu0 0
        %1086 = vmatpush1.bf16.xpose.msra.mxu0 0
        %1087 = vmatprep.subr.bf16.mxu0 0
        %1088 = vmatpush1.bf16.xpose.msra.mxu0 0
        %1089 = vmatprep.subr.bf16.mxu0 0
        %1090 = vmatpush1.bf16.xpose.msra.mxu0 0
        %1091 = vmatprep.subr.bf16.mxu0 0
        %1092 = vmatpush1.bf16.xpose.msra.mxu0 0
        %1093 = vmatprep.mubr.bf16.mxu0 0
        %1094 = vmatmul.mubr.bf16.gmra.mrb[0].mxu0 %v1056
        %v1095 = vpop.f32.mrb[0].mxu0
        %v1096 = vadd.f32 0.0, %v1095
        %v1097 = vpop.f32.mrb[0].mxu0
        %v1098 = vpop.f32.mrb[0].mxu0
        %v1099 = vadd.f32 0.0, %v1098
        %v1100 = vpop.f32.mrb[0].mxu0
        %1101 = vdwg.mxu0
        %vm1102 = vcmask 130048
        %v1103 = vsel %vm1102, %v1096, -inf
        %1104 = vmax.xlane.f32.xlu0 %v1103
        %v1105 = vpop.xlane.xlu0 %1104
        %v1106 = vsel %vm1102, %v1099, -inf
        %1107 = vmax.xlane.f32.xlu0 %v1106
        %v1108 = vpop.xlane.xlu0 %1107
        %v1109 = vsub.f32 %v1096, %v1105
        %v1110 = vsub.f32 %v1099, %v1108
        %v1111 = vmul.f32 %v1109, 1.442695
        %v1112 = vpow.pop %v1111
        %v1113 = vmul.f32 %v1110, 1.442695
        %v1114 = vpow.pop %v1113
        %v1115 = vsel %vm1102, %v1112, 0.0
        %1116 = vadd.xlane.f32.xlu0 %v1115
        %v1117 = vpop.xlane.xlu0 %1116
        %v1118 = vsel %vm1102, %v1114, 0.0
        %1119 = vadd.xlane.f32.xlu0 %v1118
        %v1120 = vpop.xlane.xlu0 %1119
        %v1121 = vrcp.pop %v1117
        %v1122 = vrcp.pop %v1120
        %v1123 = vmul.f32 %v1112, %v1121
        %v1124 = vmul.f32 %v1114, %v1122
        %v1125 = vpack.c.bf16 %v1124, %v1123
        %v1127 = vsel %vm1102, %v1125, 0
        %1129 = vmatprep.subr.bf16.mxu0 0
        %1130 = vmatpush1.bf16.msra.mxu0 %v1053
        %1131 = vmatprep.subr.bf16.mxu0 0
        %1132 = vmatpush1.bf16.msra.mxu0 0
        %1133 = vmatprep.subr.bf16.mxu0 0
        %1134 = vmatpush1.bf16.msra.mxu0 0
        %1135 = vmatprep.subr.bf16.mxu0 0
        %1136 = vmatpush1.bf16.msra.mxu0 0
        %1137 = vmatprep.subr.bf16.mxu0 0
        %1138 = vmatpush1.bf16.msra.mxu0 0
        %1139 = vmatprep.subr.bf16.mxu0 0
        %1140 = vmatpush1.bf16.msra.mxu0 0
        %1141 = vmatprep.subr.bf16.mxu0 0
        %1142 = vmatpush1.bf16.msra.mxu0 0
        %1143 = vmatprep.subr.bf16.mxu0 0
        %1144 = vmatpush1.bf16.msra.mxu0 0
        %1145 = vmatprep.subr.bf16.mxu0 0
        %1146 = vmatpush1.bf16.msra.mxu0 0
        %1147 = vmatprep.subr.bf16.mxu0 0
        %1148 = vmatpush1.bf16.msra.mxu0 0
        %1149 = vmatprep.subr.bf16.mxu0 0
        %1150 = vmatpush1.bf16.msra.mxu0 0
        %1151 = vmatprep.subr.bf16.mxu0 0
        %1152 = vmatpush1.bf16.msra.mxu0 0
        %1153 = vmatprep.subr.bf16.mxu0 0
        %1154 = vmatpush1.bf16.msra.mxu0 0
        %1155 = vmatprep.subr.bf16.mxu0 0
        %1156 = vmatpush1.bf16.msra.mxu0 0
        %1157 = vmatprep.subr.bf16.mxu0 0
        %1158 = vmatpush1.bf16.msra.mxu0 0
        %1159 = vmatprep.subr.bf16.mxu0 0
        %1160 = vmatpush1.bf16.msra.mxu0 0
        %1161 = vmatprep.mubr.bf16.mxu0 0
        %1162 = vmatmul.mubr.bf16.gmra.mrb[0].mxu0 %v1127
        %v1163 = vpop.f32.mrb[0].mxu0
        %v1164 = vadd.f32 0.0, %v1163
        %v1165 = vpop.f32.mrb[0].mxu0
        %v1166 = vpop.f32.mrb[0].mxu0
        %v1167 = vadd.f32 0.0, %v1166
        %v1168 = vpop.f32.mrb[0].mxu0
        %1169 = vdwg.mxu0
        %1170 = vst.msk [vmem:[#allocation2] sm:$0xff] %vm1054, %v1164
        %1171 = vst.msk [vmem:[#allocation2 + $0x8] sm:$0xff] %vm1054, %v1167
        %1173 = vrot.lane.b32.xlu0 %v939, 96
        %v1174 = vpop.permute.xlu0 %1173
        %1176 = vrot.lane.b32.xlu0 %v940, 96
        %v1177 = vpop.permute.xlu0 %1176
        %v1179 = vsel %vm1054, %v1174, 0
        %v1182 = vsel %vm1054, %v1177, 0
        %1184 = vmatprep.subr.bf16.mxu0 0
        %1185 = vmatpush1.bf16.xpose.msra.mxu0 %v1182
        %1186 = vmatprep.subr.bf16.mxu0 0
        %1187 = vmatpush1.bf16.xpose.msra.mxu0 0
        %1188 = vmatprep.subr.bf16.mxu0 0
        %1189 = vmatpush1.bf16.xpose.msra.mxu0 0
        %1190 = vmatprep.subr.bf16.mxu0 0
        %1191 = vmatpush1.bf16.xpose.msra.mxu0 0
        %1192 = vmatprep.subr.bf16.mxu0 0
        %1193 = vmatpush1.bf16.xpose.msra.mxu0 0
        %1194 = vmatprep.subr.bf16.mxu0 0
        %1195 = vmatpush1.bf16.xpose.msra.mxu0 0
        %1196 = vmatprep.subr.bf16.mxu0 0
        %1197 = vmatpush1.bf16.xpose.msra.mxu0 0
        %1198 = vmatprep.subr.bf16.mxu0 0
        %1199 = vmatpush1.bf16.xpose.msra.mxu0 0
        %1200 = vmatprep.subr.bf16.mxu0 0
        %1201 = vmatpush1.bf16.xpose.msra.mxu0 0
        %1202 = vmatprep.subr.bf16.mxu0 0
        %1203 = vmatpush1.bf16.xpose.msra.mxu0 0
        %1204 = vmatprep.subr.bf16.mxu0 0
        %1205 = vmatpush1.bf16.xpose.msra.mxu0 0
        %1206 = vmatprep.subr.bf16.mxu0 0
        %1207 = vmatpush1.bf16.xpose.msra.mxu0 0
        %1208 = vmatprep.subr.bf16.mxu0 0
        %1209 = vmatpush1.bf16.xpose.msra.mxu0 0
        %1210 = vmatprep.subr.bf16.mxu0 0
        %1211 = vmatpush1.bf16.xpose.msra.mxu0 0
        %1212 = vmatprep.subr.bf16.mxu0 0
        %1213 = vmatpush1.bf16.xpose.msra.mxu0 0
        %1214 = vmatprep.subr.bf16.mxu0 0
        %1215 = vmatpush1.bf16.xpose.msra.mxu0 0
        %1216 = vmatprep.mubr.bf16.mxu0 0
        %1217 = vmatmul.mubr.bf16.gmra.mrb[0].mxu0 %v1179
        %v1218 = vpop.f32.mrb[0].mxu0
        %v1219 = vadd.f32 0.0, %v1218
        %v1220 = vpop.f32.mrb[0].mxu0
        %v1221 = vpop.f32.mrb[0].mxu0
        %v1222 = vadd.f32 0.0, %v1221
        %v1223 = vpop.f32.mrb[0].mxu0
        %1224 = vdwg.mxu0
        %v1225 = vsel %vm1102, %v1219, -inf
        %1226 = vmax.xlane.f32.xlu0 %v1225
        %v1227 = vpop.xlane.xlu0 %1226
        %v1228 = vsel %vm1102, %v1222, -inf
        %1229 = vmax.xlane.f32.xlu0 %v1228
        %v1230 = vpop.xlane.xlu0 %1229
        %v1231 = vsub.f32 %v1219, %v1227
        %v1232 = vsub.f32 %v1222, %v1230
        %v1233 = vmul.f32 %v1231, 1.442695
        %v1234 = vpow.pop %v1233
        %v1235 = vmul.f32 %v1232, 1.442695
        %v1236 = vpow.pop %v1235
        %v1237 = vsel %vm1102, %v1234, 0.0
        %1238 = vadd.xlane.f32.xlu0 %v1237
        %v1239 = vpop.xlane.xlu0 %1238
        %v1240 = vsel %vm1102, %v1236, 0.0
        %1241 = vadd.xlane.f32.xlu0 %v1240
        %v1242 = vpop.xlane.xlu0 %1241
        %v1243 = vrcp.pop %v1239
        %v1244 = vrcp.pop %v1242
        %v1245 = vmul.f32 %v1234, %v1243
        %v1246 = vmul.f32 %v1236, %v1244
        %v1247 = vpack.c.bf16 %v1246, %v1245
        %1249 = vrot.lane.b32.xlu0 %v1053, 96
        %v1250 = vpop.permute.xlu0 %1249
        %v1253 = vsel %vm1102, %v1247, 0
        %1255 = vmatprep.subr.bf16.mxu0 0
        %1256 = vmatpush1.bf16.msra.mxu0 %v1250
        %1257 = vmatprep.subr.bf16.mxu0 0
        %1258 = vmatpush1.bf16.msra.mxu0 0
        %1259 = vmatprep.subr.bf16.mxu0 0
        %1260 = vmatpush1.bf16.msra.mxu0 0
        %1261 = vmatprep.subr.bf16.mxu0 0
        %1262 = vmatpush1.bf16.msra.mxu0 0
        %1263 = vmatprep.subr.bf16.mxu0 0
        %1264 = vmatpush1.bf16.msra.mxu0 0
        %1265 = vmatprep.subr.bf16.mxu0 0
        %1266 = vmatpush1.bf16.msra.mxu0 0
        %1267 = vmatprep.subr.bf16.mxu0 0
        %1268 = vmatpush1.bf16.msra.mxu0 0
        %1269 = vmatprep.subr.bf16.mxu0 0
        %1270 = vmatpush1.bf16.msra.mxu0 0
        %1271 = vmatprep.subr.bf16.mxu0 0
        %1272 = vmatpush1.bf16.msra.mxu0 0
        %1273 = vmatprep.subr.bf16.mxu0 0
        %1274 = vmatpush1.bf16.msra.mxu0 0
        %1275 = vmatprep.subr.bf16.mxu0 0
        %1276 = vmatpush1.bf16.msra.mxu0 0
        %1277 = vmatprep.subr.bf16.mxu0 0
        %1278 = vmatpush1.bf16.msra.mxu0 0
        %1279 = vmatprep.subr.bf16.mxu0 0
        %1280 = vmatpush1.bf16.msra.mxu0 0
        %1281 = vmatprep.subr.bf16.mxu0 0
        %1282 = vmatpush1.bf16.msra.mxu0 0
        %1283 = vmatprep.subr.bf16.mxu0 0
        %1284 = vmatpush1.bf16.msra.mxu0 0
        %1285 = vmatprep.subr.bf16.mxu0 0
        %1286 = vmatpush1.bf16.msra.mxu0 0
        %1287 = vmatprep.mubr.bf16.mxu0 0
        %1288 = vmatmul.mubr.bf16.gmra.mrb[0].mxu0 %v1253
        %v1289 = vpop.f32.mrb[0].mxu0
        %v1290 = vadd.f32 0.0, %v1289
        %v1291 = vpop.f32.mrb[0].mxu0
        %v1292 = vpop.f32.mrb[0].mxu0
        %v1293 = vadd.f32 0.0, %v1292
        %v1294 = vpop.f32.mrb[0].mxu0
        %1295 = vdwg.mxu0
        %1298 = vrot.lane.b32.xlu0 %v1290, 32
        %v1299 = vpop.permute.xlu0 %1298
        %1300 = vrot.lane.b32.xlu0 %v1293, 32
        %v1301 = vpop.permute.xlu0 %1300
        %vm1304 = vcmask 523520
        %1305 = vst.msk [vmem:[#allocation2] sm:$0xff] %vm1304, %v1299
        %1306 = vst.msk [vmem:[#allocation2 + $0x8] sm:$0xff] %vm1304, %v1301
        %1307 = vrot.lane.b32.xlu0 %v939, 64
        %v1308 = vpop.permute.xlu0 %1307
        %1309 = vrot.lane.b32.xlu0 %v940, 64
        %v1310 = vpop.permute.xlu0 %1309
        %v1312 = vsel %vm1054, %v1308, 0
        %v1315 = vsel %vm1054, %v1310, 0
        %1317 = vmatprep.subr.bf16.mxu0 0
        %1318 = vmatpush1.bf16.xpose.msra.mxu0 %v1315
        %1319 = vmatprep.subr.bf16.mxu0 0
        %1320 = vmatpush1.bf16.xpose.msra.mxu0 0
        %1321 = vmatprep.subr.bf16.mxu0 0
        %1322 = vmatpush1.bf16.xpose.msra.mxu0 0
        %1323 = vmatprep.subr.bf16.mxu0 0
        %1324 = vmatpush1.bf16.xpose.msra.mxu0 0
        %1325 = vmatprep.subr.bf16.mxu0 0
        %1326 = vmatpush1.bf16.xpose.msra.mxu0 0
        %1327 = vmatprep.subr.bf16.mxu0 0
        %1328 = vmatpush1.bf16.xpose.msra.mxu0 0
        %1329 = vmatprep.subr.bf16.mxu0 0
        %1330 = vmatpush1.bf16.xpose.msra.mxu0 0
        %1331 = vmatprep.subr.bf16.mxu0 0
        %1332 = vmatpush1.bf16.xpose.msra.mxu0 0
        %1333 = vmatprep.subr.bf16.mxu0 0
        %1334 = vmatpush1.bf16.xpose.msra.mxu0 0
        %1335 = vmatprep.subr.bf16.mxu0 0
        %1336 = vmatpush1.bf16.xpose.msra.mxu0 0
        %1337 = vmatprep.subr.bf16.mxu0 0
        %1338 = vmatpush1.bf16.xpose.msra.mxu0 0
        %1339 = vmatprep.subr.bf16.mxu0 0
        %1340 = vmatpush1.bf16.xpose.msra.mxu0 0
        %1341 = vmatprep.subr.bf16.mxu0 0
        %1342 = vmatpush1.bf16.xpose.msra.mxu0 0
        %1343 = vmatprep.subr.bf16.mxu0 0
        %1344 = vmatpush1.bf16.xpose.msra.mxu0 0
        %1345 = vmatprep.subr.bf16.mxu0 0
        %1346 = vmatpush1.bf16.xpose.msra.mxu0 0
        %1347 = vmatprep.subr.bf16.mxu0 0
        %1348 = vmatpush1.bf16.xpose.msra.mxu0 0
        %1349 = vmatprep.mubr.bf16.mxu0 0
        %1350 = vmatmul.mubr.bf16.gmra.mrb[0].mxu0 %v1312
        %v1351 = vpop.f32.mrb[0].mxu0
        %v1352 = vadd.f32 0.0, %v1351
        %v1353 = vpop.f32.mrb[0].mxu0
        %v1354 = vpop.f32.mrb[0].mxu0
        %v1355 = vadd.f32 0.0, %v1354
        %v1356 = vpop.f32.mrb[0].mxu0
        %1357 = vdwg.mxu0
        %v1358 = vsel %vm1102, %v1352, -inf
        %1359 = vmax.xlane.f32.xlu0 %v1358
        %v1360 = vpop.xlane.xlu0 %1359
        %v1361 = vsel %vm1102, %v1355, -inf
        %1362 = vmax.xlane.f32.xlu0 %v1361
        %v1363 = vpop.xlane.xlu0 %1362
        %v1364 = vsub.f32 %v1352, %v1360
        %v1365 = vsub.f32 %v1355, %v1363
        %v1366 = vmul.f32 %v1364, 1.442695
        %v1367 = vpow.pop %v1366
        %v1368 = vmul.f32 %v1365, 1.442695
        %v1369 = vpow.pop %v1368
        %v1370 = vsel %vm1102, %v1367, 0.0
        %1371 = vadd.xlane.f32.xlu0 %v1370
        %v1372 = vpop.xlane.xlu0 %1371
        %v1373 = vsel %vm1102, %v1369, 0.0
        %1374 = vadd.xlane.f32.xlu0 %v1373
        %v1375 = vpop.xlane.xlu0 %1374
        %v1376 = vrcp.pop %v1372
        %v1377 = vrcp.pop %v1375
        %v1378 = vmul.f32 %v1367, %v1376
        %v1379 = vmul.f32 %v1369, %v1377
        %v1380 = vpack.c.bf16 %v1379, %v1378
        %1381 = vrot.lane.b32.xlu0 %v1053, 64
        %v1382 = vpop.permute.xlu0 %1381
        %v1385 = vsel %vm1102, %v1380, 0
        %1387 = vmatprep.subr.bf16.mxu0 0
        %1388 = vmatpush1.bf16.msra.mxu0 %v1382
        %1389 = vmatprep.subr.bf16.mxu0 0
        %1390 = vmatpush1.bf16.msra.mxu0 0
        %1391 = vmatprep.subr.bf16.mxu0 0
        %1392 = vmatpush1.bf16.msra.mxu0 0
        %1393 = vmatprep.subr.bf16.mxu0 0
        %1394 = vmatpush1.bf16.msra.mxu0 0
        %1395 = vmatprep.subr.bf16.mxu0 0
        %1396 = vmatpush1.bf16.msra.mxu0 0
        %1397 = vmatprep.subr.bf16.mxu0 0
        %1398 = vmatpush1.bf16.msra.mxu0 0
        %1399 = vmatprep.subr.bf16.mxu0 0
        %1400 = vmatpush1.bf16.msra.mxu0 0
        %1401 = vmatprep.subr.bf16.mxu0 0
        %1402 = vmatpush1.bf16.msra.mxu0 0
        %1403 = vmatprep.subr.bf16.mxu0 0
        %1404 = vmatpush1.bf16.msra.mxu0 0
        %1405 = vmatprep.subr.bf16.mxu0 0
        %1406 = vmatpush1.bf16.msra.mxu0 0
        %1407 = vmatprep.subr.bf16.mxu0 0
        %1408 = vmatpush1.bf16.msra.mxu0 0
        %1409 = vmatprep.subr.bf16.mxu0 0
        %1410 = vmatpush1.bf16.msra.mxu0 0
        %1411 = vmatprep.subr.bf16.mxu0 0
        %1412 = vmatpush1.bf16.msra.mxu0 0
        %1413 = vmatprep.subr.bf16.mxu0 0
        %1414 = vmatpush1.bf16.msra.mxu0 0
        %1415 = vmatprep.subr.bf16.mxu0 0
        %1416 = vmatpush1.bf16.msra.mxu0 0
        %1417 = vmatprep.subr.bf16.mxu0 0
        %1418 = vmatpush1.bf16.msra.mxu0 0
        %1419 = vmatprep.mubr.bf16.mxu0 0
        %1420 = vmatmul.mubr.bf16.gmra.mrb[0].mxu0 %v1385
        %v1421 = vpop.f32.mrb[0].mxu0
        %v1422 = vadd.f32 0.0, %v1421
        %v1423 = vpop.f32.mrb[0].mxu0
        %v1424 = vpop.f32.mrb[0].mxu0
        %v1425 = vadd.f32 0.0, %v1424
        %v1426 = vpop.f32.mrb[0].mxu0
        %1427 = vdwg.mxu0
        %1430 = vrot.lane.b32.xlu0 %v1422, 64
        %v1431 = vpop.permute.xlu0 %1430
        %1432 = vrot.lane.b32.xlu0 %v1425, 64
        %v1433 = vpop.permute.xlu0 %1432
        %vm1436 = vcmask 785920
        %1437 = vst.msk [vmem:[#allocation2] sm:$0xff] %vm1436, %v1431
        %1438 = vst.msk [vmem:[#allocation2 + $0x8] sm:$0xff] %vm1436, %v1433
        %1439 = vrot.lane.b32.xlu0 %v939, 32
        %v1440 = vpop.permute.xlu0 %1439
        %1441 = vrot.lane.b32.xlu0 %v940, 32
        %v1442 = vpop.permute.xlu0 %1441
        %v1444 = vsel %vm1054, %v1440, 0
        %v1447 = vsel %vm1054, %v1442, 0
        %1449 = vmatprep.subr.bf16.mxu0 0
        %1450 = vmatpush1.bf16.xpose.msra.mxu0 %v1447
        %1451 = vmatprep.subr.bf16.mxu0 0
        %1452 = vmatpush1.bf16.xpose.msra.mxu0 0
        %1453 = vmatprep.subr.bf16.mxu0 0
        %1454 = vmatpush1.bf16.xpose.msra.mxu0 0
        %1455 = vmatprep.subr.bf16.mxu0 0
        %1456 = vmatpush1.bf16.xpose.msra.mxu0 0
        %1457 = vmatprep.subr.bf16.mxu0 0
        %1458 = vmatpush1.bf16.xpose.msra.mxu0 0
        %1459 = vmatprep.subr.bf16.mxu0 0
        %1460 = vmatpush1.bf16.xpose.msra.mxu0 0
        %1461 = vmatprep.subr.bf16.mxu0 0
        %1462 = vmatpush1.bf16.xpose.msra.mxu0 0
        %1463 = vmatprep.subr.bf16.mxu0 0
        %1464 = vmatpush1.bf16.xpose.msra.mxu0 0
        %1465 = vmatprep.subr.bf16.mxu0 0
        %1466 = vmatpush1.bf16.xpose.msra.mxu0 0
        %1467 = vmatprep.subr.bf16.mxu0 0
        %1468 = vmatpush1.bf16.xpose.msra.mxu0 0
        %1469 = vmatprep.subr.bf16.mxu0 0
        %1470 = vmatpush1.bf16.xpose.msra.mxu0 0
        %1471 = vmatprep.subr.bf16.mxu0 0
        %1472 = vmatpush1.bf16.xpose.msra.mxu0 0
        %1473 = vmatprep.subr.bf16.mxu0 0
        %1474 = vmatpush1.bf16.xpose.msra.mxu0 0
        %1475 = vmatprep.subr.bf16.mxu0 0
        %1476 = vmatpush1.bf16.xpose.msra.mxu0 0
        %1477 = vmatprep.subr.bf16.mxu0 0
        %1478 = vmatpush1.bf16.xpose.msra.mxu0 0
        %1479 = vmatprep.subr.bf16.mxu0 0
        %1480 = vmatpush1.bf16.xpose.msra.mxu0 0
        %1481 = vmatprep.mubr.bf16.mxu0 0
        %1482 = vmatmul.mubr.bf16.gmra.mrb[0].mxu0 %v1444
        %v1483 = vpop.f32.mrb[0].mxu0
        %v1484 = vadd.f32 0.0, %v1483
        %v1485 = vpop.f32.mrb[0].mxu0
        %v1486 = vpop.f32.mrb[0].mxu0
        %v1487 = vadd.f32 0.0, %v1486
        %v1488 = vpop.f32.mrb[0].mxu0
        %1489 = vdwg.mxu0
        %v1490 = vsel %vm1102, %v1484, -inf
        %1491 = vmax.xlane.f32.xlu0 %v1490
        %v1492 = vpop.xlane.xlu0 %1491
        %v1493 = vsel %vm1102, %v1487, -inf
        %1494 = vmax.xlane.f32.xlu0 %v1493
        %v1495 = vpop.xlane.xlu0 %1494
        %v1496 = vsub.f32 %v1484, %v1492
        %v1497 = vsub.f32 %v1487, %v1495
        %v1498 = vmul.f32 %v1496, 1.442695
        %v1499 = vpow.pop %v1498
        %v1500 = vmul.f32 %v1497, 1.442695
        %v1501 = vpow.pop %v1500
        %v1502 = vsel %vm1102, %v1499, 0.0
        %1503 = vadd.xlane.f32.xlu0 %v1502
        %v1504 = vpop.xlane.xlu0 %1503
        %v1505 = vsel %vm1102, %v1501, 0.0
        %1506 = vadd.xlane.f32.xlu0 %v1505
        %v1507 = vpop.xlane.xlu0 %1506
        %v1508 = vrcp.pop %v1504
        %v1509 = vrcp.pop %v1507
        %v1510 = vmul.f32 %v1499, %v1508
        %v1511 = vmul.f32 %v1501, %v1509
        %v1512 = vpack.c.bf16 %v1511, %v1510
        %1513 = vrot.lane.b32.xlu0 %v1053, 32
        %v1514 = vpop.permute.xlu0 %1513
        %v1517 = vsel %vm1102, %v1512, 0
        %1519 = vmatprep.subr.bf16.mxu0 0
        %1520 = vmatpush1.bf16.msra.mxu0 %v1514
        %1521 = vmatprep.subr.bf16.mxu0 0
        %1522 = vmatpush1.bf16.msra.mxu0 0
        %1523 = vmatprep.subr.bf16.mxu0 0
        %1524 = vmatpush1.bf16.msra.mxu0 0
        %1525 = vmatprep.subr.bf16.mxu0 0
        %1526 = vmatpush1.bf16.msra.mxu0 0
        %1527 = vmatprep.subr.bf16.mxu0 0
        %1528 = vmatpush1.bf16.msra.mxu0 0
        %1529 = vmatprep.subr.bf16.mxu0 0
        %1530 = vmatpush1.bf16.msra.mxu0 0
        %1531 = vmatprep.subr.bf16.mxu0 0
        %1532 = vmatpush1.bf16.msra.mxu0 0
        %1533 = vmatprep.subr.bf16.mxu0 0
        %1534 = vmatpush1.bf16.msra.mxu0 0
        %1535 = vmatprep.subr.bf16.mxu0 0
        %1536 = vmatpush1.bf16.msra.mxu0 0
        %1537 = vmatprep.subr.bf16.mxu0 0
        %1538 = vmatpush1.bf16.msra.mxu0 0
        %1539 = vmatprep.subr.bf16.mxu0 0
        %1540 = vmatpush1.bf16.msra.mxu0 0
        %1541 = vmatprep.subr.bf16.mxu0 0
        %1542 = vmatpush1.bf16.msra.mxu0 0
        %1543 = vmatprep.subr.bf16.mxu0 0
        %1544 = vmatpush1.bf16.msra.mxu0 0
        %1545 = vmatprep.subr.bf16.mxu0 0
        %1546 = vmatpush1.bf16.msra.mxu0 0
        %1547 = vmatprep.subr.bf16.mxu0 0
        %1548 = vmatpush1.bf16.msra.mxu0 0
        %1549 = vmatprep.subr.bf16.mxu0 0
        %1550 = vmatpush1.bf16.msra.mxu0 0
        %1551 = vmatprep.mubr.bf16.mxu0 0
        %1552 = vmatmul.mubr.bf16.gmra.mrb[0].mxu0 %v1517
        %v1553 = vpop.f32.mrb[0].mxu0
        %v1554 = vadd.f32 0.0, %v1553
        %v1555 = vpop.f32.mrb[0].mxu0
        %v1556 = vpop.f32.mrb[0].mxu0
        %v1557 = vadd.f32 0.0, %v1556
        %v1558 = vpop.f32.mrb[0].mxu0
        %1559 = vdwg.mxu0
        %1562 = vrot.lane.b32.xlu0 %v1554, 96
        %v1563 = vpop.permute.xlu0 %1562
        %1564 = vrot.lane.b32.xlu0 %v1557, 96
        %v1565 = vpop.permute.xlu0 %1564
        %vm1568 = vcmask 1048320
        %1569 = vst.msk [vmem:[#allocation2] sm:$0xff] %vm1568, %v1563
        %1570 = vst.msk [vmem:[#allocation2 + $0x8] sm:$0xff] %vm1568, %v1565
        %v1571 = vld [vmem:[#allocation2] sm:$0xff]
        %v1572 = vld [vmem:[#allocation2 + $0x8] sm:$0xff]
        %v1573 = vpack.c.bf16 %v1572, %v1571
        %v1574 = vld [vmem:[#allocation14] sm:$0xf]
        %v1575 = vld [vmem:[#allocation14 + $0x4] sm:$0xf]
        %v1576 = vld [vmem:[#allocation14 + $0x8] sm:$0xf]
        %v1577 = vld [vmem:[#allocation14 + $0xc] sm:$0xf]
        %v1578 = vld [vmem:[#allocation14 + $0x10] sm:$0xf]
        %v1579 = vld [vmem:[#allocation14 + $0x14] sm:$0xf]
        %v1580 = vld [vmem:[#allocation14 + $0x18] sm:$0xf]
        %v1581 = vld [vmem:[#allocation14 + $0x1c] sm:$0xf]
        %v1582 = vld [vmem:[#allocation14 + $0x20] sm:$0xf]
        %v1583 = vld [vmem:[#allocation14 + $0x24] sm:$0xf]
        %v1584 = vld [vmem:[#allocation14 + $0x28] sm:$0xf]
        %v1585 = vld [vmem:[#allocation14 + $0x2c] sm:$0xf]
        %v1586 = vld [vmem:[#allocation14 + $0x30] sm:$0xf]
        %v1587 = vld [vmem:[#allocation14 + $0x34] sm:$0xf]
        %v1588 = vld [vmem:[#allocation14 + $0x38] sm:$0xf]
        %v1589 = vld [vmem:[#allocation14 + $0x3c] sm:$0xf]
        %v1590 = vld [vmem:[%s11] sm:$0x1]
        %v1592 = vlaneseq
        %v1593 = vshrl.u32 %v1592, 7
        %v1594 = vsub.s32 0, %v1593
        %v1595 = vrot.slane %v1590, %v1594
        %v1613 = vunpack.c.l.b16 %v1574
        %v1614 = vunpack.c.l.b16 %v1575
        %v1615 = vunpack.c.l.b16 %v1576
        %v1616 = vunpack.c.l.b16 %v1577
        %v1617 = vunpack.c.l.b16 %v1578
        %v1618 = vunpack.c.l.b16 %v1579
        %v1619 = vunpack.c.l.b16 %v1580
        %v1620 = vunpack.c.l.b16 %v1581
        %v1621 = vunpack.c.l.b16 %v1582
        %v1622 = vunpack.c.l.b16 %v1583
        %v1623 = vunpack.c.l.b16 %v1584
        %v1624 = vunpack.c.l.b16 %v1585
        %v1625 = vunpack.c.l.b16 %v1586
        %v1626 = vunpack.c.l.b16 %v1587
        %v1627 = vunpack.c.l.b16 %v1588
        %v1628 = vunpack.c.l.b16 %v1589
        %v1629 = vpack.c.b16 %v1614, %v1613
        %v1630 = vpack.c.b16 %v1616, %v1615
        %v1631 = vpack.c.b16 %v1618, %v1617
        %v1632 = vpack.c.b16 %v1620, %v1619
        %v1633 = vpack.c.b16 %v1622, %v1621
        %v1634 = vpack.c.b16 %v1624, %v1623
        %v1635 = vpack.c.b16 %v1626, %v1625
        %v1636 = vpack.c.b16 %v1628, %v1627
        %1645 = vmatprep.subr.bf16.mxu0 0
        %1646 = vmatpush1.bf16.msra.mxu0 %v1629
        %1647 = vmatprep.subr.bf16.mxu0 0
        %1648 = vmatpush1.bf16.msra.mxu0 %v1630
        %1649 = vmatprep.subr.bf16.mxu0 0
        %1650 = vmatpush1.bf16.msra.mxu0 %v1631
        %1651 = vmatprep.subr.bf16.mxu0 0
        %1652 = vmatpush1.bf16.msra.mxu0 %v1632
        %1653 = vmatprep.subr.bf16.mxu0 0
        %1654 = vmatpush1.bf16.msra.mxu0 %v1633
        %1655 = vmatprep.subr.bf16.mxu0 0
        %1656 = vmatpush1.bf16.msra.mxu0 %v1634
        %1657 = vmatprep.subr.bf16.mxu0 0
        %1658 = vmatpush1.bf16.msra.mxu0 %v1635
        %1659 = vmatprep.subr.bf16.mxu0 0
        %1660 = vmatpush1.bf16.msra.mxu0 %v1636
        %1661 = vmatprep.subr.bf16.mxu0 0
        %1662 = vmatpush1.bf16.msra.mxu0 0
        %1663 = vmatprep.subr.bf16.mxu0 0
        %1664 = vmatpush1.bf16.msra.mxu0 0
        %1665 = vmatprep.subr.bf16.mxu0 0
        %1666 = vmatpush1.bf16.msra.mxu0 0
        %1667 = vmatprep.subr.bf16.mxu0 0
        %1668 = vmatpush1.bf16.msra.mxu0 0
        %1669 = vmatprep.subr.bf16.mxu0 0
        %1670 = vmatpush1.bf16.msra.mxu0 0
        %1671 = vmatprep.subr.bf16.mxu0 0
        %1672 = vmatpush1.bf16.msra.mxu0 0
        %1673 = vmatprep.subr.bf16.mxu0 0
        %1674 = vmatpush1.bf16.msra.mxu0 0
        %1675 = vmatprep.subr.bf16.mxu0 0
        %1676 = vmatpush1.bf16.msra.mxu0 0
        %1677 = vmatprep.mubr.bf16.mxu0 0
        %1678 = vmatmul.mubr.bf16.gmra.mrb[0].mxu0 %v1573
        %v1679 = vpop.f32.mrb[0].mxu0
        %v1680 = vadd.f32 %v1595, %v1679
        %v1681 = vpop.f32.mrb[0].mxu0
        %v1682 = vpop.f32.mrb[0].mxu0
        %v1683 = vadd.f32 %v1595, %v1682
        %v1684 = vpop.f32.mrb[0].mxu0
        %1685 = vdwg.mxu0
        %v1686 = vadd.f32 %v1680, %v711
        %v1687 = vadd.f32 %v1683, %v712
        %1688 = vadd.xlane.f32.xlu0 %v1686
        %v1689 = vpop.xlane.xlu0 %1688
        %1690 = vadd.xlane.f32.xlu0 %v1687
        %v1691 = vpop.xlane.xlu0 %1690
        %v1692 = vmul.f32 %v1689, %v717
        %v1693 = vmul.f32 %v1691, %v717
        %v1694 = vsub.f32 %v1686, %v1692
        %v1695 = vsub.f32 %v1687, %v1693
        %v1696 = vmul.f32 %v1694, %v1694
        %v1697 = vmul.f32 %v1695, %v1695
        %1698 = vadd.xlane.f32.xlu0 %v1696
        %v1699 = vpop.xlane.xlu0 %1698
        %1700 = vadd.xlane.f32.xlu0 %v1697
        %v1701 = vpop.xlane.xlu0 %1700
        %v1702 = vmul.f32 %v1699, %v717
        %v1703 = vmul.f32 %v1701, %v717
        %v1704 = vadd.f32 %v1702, 1e-06
        %v1705 = vadd.f32 %v1703, 1e-06
        %v1706 = vrsqrt.pop %v1704
        %v1707 = vrsqrt.pop %v1705
        %v1708 = vmul.f32 %v1694, %v1706
        %v1709 = vmul.f32 %v1695, %v1707
        %v1710 = vld [vmem:[%s12] sm:$0x1]
        %v1712 = vlaneseq
        %v1713 = vshrl.u32 %v1712, 7
        %v1714 = vsub.s32 0, %v1713
        %v1715 = vrot.slane %v1710, %v1714
        %v1717 = vmul.f32 %v1708, %v1715
        %v1718 = vmul.f32 %v1709, %v1715
        %v1719 = vld [vmem:[%s13] sm:$0x1]
        %v1721 = vlaneseq
        %v1722 = vshrl.u32 %v1721, 7
        %v1723 = vsub.s32 0, %v1722
        %v1724 = vrot.slane %v1719, %v1723
        %v1726 = vadd.f32 %v1717, %v1724
        %v1727 = vadd.f32 %v1718, %v1724
        %v1728 = vpack.c.bf16 %v1727, %v1726
        %v1729 = vld [vmem:[#allocation15] sm:$0xff]
        %v1730 = vld [vmem:[#allocation15 + $0x8] sm:$0xff]
        %v1731 = vld [vmem:[#allocation15 + $0x10] sm:$0xff]
        %v1732 = vld [vmem:[#allocation15 + $0x18] sm:$0xff]
        %v1733 = vld [vmem:[#allocation15 + $0x20] sm:$0xff]
        %v1734 = vld [vmem:[#allocation15 + $0x28] sm:$0xff]
        %v1735 = vld [vmem:[#allocation15 + $0x30] sm:$0xff]
        %v1736 = vld [vmem:[#allocation15 + $0x38] sm:$0xff]
        %v1737 = vld [vmem:[#allocation15 + $0x40] sm:$0xff]
        %v1738 = vld [vmem:[#allocation15 + $0x48] sm:$0xff]
        %v1739 = vld [vmem:[#allocation15 + $0x50] sm:$0xff]
        %v1740 = vld [vmem:[#allocation15 + $0x58] sm:$0xff]
        %v1741 = vld [vmem:[#allocation15 + $0x60] sm:$0xff]
        %v1742 = vld [vmem:[#allocation15 + $0x68] sm:$0xff]
        %v1743 = vld [vmem:[#allocation15 + $0x70] sm:$0xff]
        %v1744 = vld [vmem:[#allocation15 + $0x78] sm:$0xff]
        %v1745 = vld [vmem:[%s15] sm:$0x3]
        %v1747 = vlaneseq
        %v1748 = vshrl.u32 %v1747, 7
        %v1749 = vsub.s32 0, %v1748
        %v1750 = vrot.slane %v1745, %v1749
        %v1751 = vlaneseq
        %v1752 = vshrl.u32 %v1751, 7
        %v1753 = vsub.s32 1, %v1752
        %v1754 = vrot.slane %v1745, %v1753
        %v1773 = vunpack.c.l.b16 %v1729
        %v1774 = vunpack.c.h.b16 %v1729
        %v1775 = vunpack.c.l.b16 %v1730
        %v1776 = vunpack.c.h.b16 %v1730
        %v1777 = vunpack.c.l.b16 %v1731
        %v1778 = vunpack.c.h.b16 %v1731
        %v1779 = vunpack.c.l.b16 %v1732
        %v1780 = vunpack.c.h.b16 %v1732
        %v1781 = vunpack.c.l.b16 %v1733
        %v1782 = vunpack.c.h.b16 %v1733
        %v1783 = vunpack.c.l.b16 %v1734
        %v1784 = vunpack.c.h.b16 %v1734
        %v1785 = vunpack.c.l.b16 %v1735
        %v1786 = vunpack.c.h.b16 %v1735
        %v1787 = vunpack.c.l.b16 %v1736
        %v1788 = vunpack.c.h.b16 %v1736
        %v1789 = vunpack.c.l.b16 %v1737
        %v1790 = vunpack.c.h.b16 %v1737
        %v1791 = vunpack.c.l.b16 %v1738
        %v1792 = vunpack.c.h.b16 %v1738
        %v1793 = vunpack.c.l.b16 %v1739
        %v1794 = vunpack.c.h.b16 %v1739
        %v1795 = vunpack.c.l.b16 %v1740
        %v1796 = vunpack.c.h.b16 %v1740
        %v1797 = vunpack.c.l.b16 %v1741
        %v1798 = vunpack.c.h.b16 %v1741
        %v1799 = vunpack.c.l.b16 %v1742
        %v1800 = vunpack.c.h.b16 %v1742
        %v1801 = vunpack.c.l.b16 %v1743
        %v1802 = vunpack.c.h.b16 %v1743
        %v1803 = vunpack.c.l.b16 %v1744
        %v1804 = vunpack.c.h.b16 %v1744
        %v1805 = vpack.c.b16 %v1775, %v1773
        %v1806 = vpack.c.b16 %v1776, %v1774
        %v1807 = vpack.c.b16 %v1779, %v1777
        %v1808 = vpack.c.b16 %v1780, %v1778
        %v1809 = vpack.c.b16 %v1783, %v1781
        %v1810 = vpack.c.b16 %v1784, %v1782
        %v1811 = vpack.c.b16 %v1787, %v1785
        %v1812 = vpack.c.b16 %v1788, %v1786
        %v1813 = vpack.c.b16 %v1791, %v1789
        %v1814 = vpack.c.b16 %v1792, %v1790
        %v1815 = vpack.c.b16 %v1795, %v1793
        %v1816 = vpack.c.b16 %v1796, %v1794
        %v1817 = vpack.c.b16 %v1799, %v1797
        %v1818 = vpack.c.b16 %v1800, %v1798
        %v1819 = vpack.c.b16 %v1803, %v1801
        %v1820 = vpack.c.b16 %v1804, %v1802
        %1837 = vmatprep.subr.bf16.mxu0 %v1806
        %1838 = vmatpush1.bf16.msra.mxu0 %v1805
        %1839 = vmatprep.subr.bf16.mxu0 %v1808
        %1840 = vmatpush1.bf16.msra.mxu0 %v1807
        %1841 = vmatprep.subr.bf16.mxu0 %v1810
        %1842 = vmatpush1.bf16.msra.mxu0 %v1809
        %1843 = vmatprep.subr.bf16.mxu0 %v1812
        %1844 = vmatpush1.bf16.msra.mxu0 %v1811
        %1845 = vmatprep.subr.bf16.mxu0 %v1814
        %1846 = vmatpush1.bf16.msra.mxu0 %v1813
        %1847 = vmatprep.subr.bf16.mxu0 %v1816
        %1848 = vmatpush1.bf16.msra.mxu0 %v1815
        %1849 = vmatprep.subr.bf16.mxu0 %v1818
        %1850 = vmatpush1.bf16.msra.mxu0 %v1817
        %1851 = vmatprep.subr.bf16.mxu0 %v1820
        %1852 = vmatpush1.bf16.msra.mxu0 %v1819
        %1853 = vmatprep.subr.bf16.mxu0 0
        %1854 = vmatpush1.bf16.msra.mxu0 0
        %1855 = vmatprep.subr.bf16.mxu0 0
        %1856 = vmatpush1.bf16.msra.mxu0 0
        %1857 = vmatprep.subr.bf16.mxu0 0
        %1858 = vmatpush1.bf16.msra.mxu0 0
        %1859 = vmatprep.subr.bf16.mxu0 0
        %1860 = vmatpush1.bf16.msra.mxu0 0
        %1861 = vmatprep.subr.bf16.mxu0 0
        %1862 = vmatpush1.bf16.msra.mxu0 0
        %1863 = vmatprep.subr.bf16.mxu0 0
        %1864 = vmatpush1.bf16.msra.mxu0 0
        %1865 = vmatprep.subr.bf16.mxu0 0
        %1866 = vmatpush1.bf16.msra.mxu0 0
        %1867 = vmatprep.subr.bf16.mxu0 0
        %1868 = vmatpush1.bf16.msra.mxu0 0
        %1869 = vmatprep.mubr.bf16.mxu0 0
        %1870 = vmatmul.mubr.bf16.gmra.mrb[0].mxu0 %v1728
        %v1871 = vpop.f32.mrb[0].mxu0
        %v1872 = vadd.f32 %v1750, %v1871
        %v1873 = vpop.f32.mrb[0].mxu0
        %v1874 = vadd.f32 %v1754, %v1873
        %v1875 = vpop.f32.mrb[0].mxu0
        %v1876 = vadd.f32 %v1750, %v1875
        %v1877 = vpop.f32.mrb[0].mxu0
        %v1878 = vadd.f32 %v1754, %v1877
        %1879 = vdwg.mxu0
        %v1880 = vmul.f32 %v1872, 0.70710677
        %v1881 = vmul.f32 %v1874, 0.70710677
        %v1882 = vmul.f32 %v1876, 0.70710677
        %v1883 = vmul.f32 %v1878, 0.70710677
        %v1884 = vand.u32 2147483647, %v1880
        %v1885 = vand.u32 2147483647, %v1881
        %v1886 = vand.u32 2147483647, %v1882
        %v1887 = vand.u32 2147483647, %v1883
        %v1888 = vmul.f32 %v1884, 0.3275911
        %v1889 = vmul.f32 %v1885, 0.3275911
        %v1890 = vmul.f32 %v1886, 0.3275911
        %v1891 = vmul.f32 %v1887, 0.3275911
        %v1892 = vadd.f32 %v1888, 1.0
        %v1893 = vadd.f32 %v1889, 1.0
        %v1894 = vadd.f32 %v1890, 1.0
        %v1895 = vadd.f32 %v1891, 1.0
        %v1896 = vrcp.pop %v1892
        %v1897 = vmul.f32 1.0, %v1896
        %v1898 = vrcp.pop %v1893
        %v1899 = vmul.f32 1.0, %v1898
        %v1900 = vrcp.pop %v1894
        %v1901 = vmul.f32 1.0, %v1900
        %v1902 = vrcp.pop %v1895
        %v1903 = vmul.f32 1.0, %v1902
        %v1904 = vmul.f32 %v1897, 1.0614054
        %v1905 = vmul.f32 %v1899, 1.0614054
        %v1906 = vmul.f32 %v1901, 1.0614054
        %v1907 = vmul.f32 %v1903, 1.0614054
        %v1908 = vadd.f32 %v1904, -1.4531521
        %v1909 = vadd.f32 %v1905, -1.4531521
        %v1910 = vadd.f32 %v1906, -1.4531521
        %v1911 = vadd.f32 %v1907, -1.4531521
        %v1912 = vmul.f32 %v1897, %v1908
        %v1913 = vmul.f32 %v1899, %v1909
        %v1914 = vmul.f32 %v1901, %v1910
        %v1915 = vmul.f32 %v1903, %v1911
        %v1916 = vadd.f32 %v1912, 1.4214138
        %v1917 = vadd.f32 %v1913, 1.4214138
        %v1918 = vadd.f32 %v1914, 1.4214138
        %v1919 = vadd.f32 %v1915, 1.4214138
        %v1920 = vmul.f32 %v1897, %v1916
        %v1921 = vmul.f32 %v1899, %v1917
        %v1922 = vmul.f32 %v1901, %v1918
        %v1923 = vmul.f32 %v1903, %v1919
        %v1924 = vadd.f32 %v1920, -0.28449672
        %v1925 = vadd.f32 %v1921, -0.28449672
        %v1926 = vadd.f32 %v1922, -0.28449672
        %v1927 = vadd.f32 %v1923, -0.28449672
        %v1928 = vmul.f32 %v1897, %v1924
        %v1929 = vmul.f32 %v1899, %v1925
        %v1930 = vmul.f32 %v1901, %v1926
        %v1931 = vmul.f32 %v1903, %v1927
        %v1932 = vadd.f32 %v1928, 0.2548296
        %v1933 = vadd.f32 %v1929, 0.2548296
        %v1934 = vadd.f32 %v1930, 0.2548296
        %v1935 = vadd.f32 %v1931, 0.2548296
        %v1936 = vmul.f32 %v1897, %v1932
        %v1937 = vmul.f32 %v1899, %v1933
        %v1938 = vmul.f32 %v1901, %v1934
        %v1939 = vmul.f32 %v1903, %v1935
        %v1940 = vsub.f32 0.0, %v1884
        %v1941 = vsub.f32 0.0, %v1885
        %v1942 = vsub.f32 0.0, %v1886
        %v1943 = vsub.f32 0.0, %v1887
        %v1944 = vmul.f32 %v1940, %v1884
        %v1945 = vmul.f32 %v1941, %v1885
        %v1946 = vmul.f32 %v1942, %v1886
        %v1947 = vmul.f32 %v1943, %v1887
        %v1948 = vmul.f32 %v1944, 1.442695
        %v1949 = vpow.pop %v1948
        %v1950 = vmul.f32 %v1945, 1.442695
        %v1951 = vpow.pop %v1950
        %v1952 = vmul.f32 %v1946, 1.442695
        %v1953 = vpow.pop %v1952
        %v1954 = vmul.f32 %v1947, 1.442695
        %v1955 = vpow.pop %v1954
        %v1956 = vmul.f32 %v1936, %v1949
        %v1957 = vmul.f32 %v1937, %v1951
        %v1958 = vmul.f32 %v1938, %v1953
        %v1959 = vmul.f32 %v1939, %v1955
        %v1960 = vsub.f32 1.0, %v1956
        %v1961 = vsub.f32 1.0, %v1957
        %v1962 = vsub.f32 1.0, %v1958
        %v1963 = vsub.f32 1.0, %v1959
        %vm1964 = vcmp.ge.f32.partialorder %v1880, 0.0
        %vm1965 = vcmp.ge.f32.partialorder %v1881, 0.0
        %vm1966 = vcmp.ge.f32.partialorder %v1882, 0.0
        %vm1967 = vcmp.ge.f32.partialorder %v1883, 0.0
        %v1968 = vsub.f32 0.0, %v1960
        %v1969 = vsub.f32 0.0, %v1961
        %v1970 = vsub.f32 0.0, %v1962
        %v1971 = vsub.f32 0.0, %v1963
        %v1972 = vsel %vm1964, %v1960, %v1968
        %v1973 = vsel %vm1965, %v1961, %v1969
        %v1974 = vsel %vm1966, %v1962, %v1970
        %v1975 = vsel %vm1967, %v1963, %v1971
        %v1976 = vmul.f32 %v1872, 0.5
        %v1977 = vmul.f32 %v1874, 0.5
        %v1978 = vmul.f32 %v1876, 0.5
        %v1979 = vmul.f32 %v1878, 0.5
        %v1980 = vadd.f32 %v1972, 1.0
        %v1981 = vadd.f32 %v1973, 1.0
        %v1982 = vadd.f32 %v1974, 1.0
        %v1983 = vadd.f32 %v1975, 1.0
        %v1984 = vmul.f32 %v1976, %v1980
        %v1985 = vmul.f32 %v1977, %v1981
        %v1986 = vmul.f32 %v1978, %v1982
        %v1987 = vmul.f32 %v1979, %v1983
        %v1988 = vpack.c.bf16 %v1986, %v1984
        %v1989 = vpack.c.bf16 %v1987, %v1985
        %v1990 = vld [vmem:[#allocation17] sm:$0xf]
        %v1991 = vld [vmem:[#allocation17 + $0x4] sm:$0xf]
        %v1992 = vld [vmem:[#allocation17 + $0x8] sm:$0xf]
        %v1993 = vld [vmem:[#allocation17 + $0xc] sm:$0xf]
        %v1994 = vld [vmem:[#allocation17 + $0x10] sm:$0xf]
        %v1995 = vld [vmem:[#allocation17 + $0x14] sm:$0xf]
        %v1996 = vld [vmem:[#allocation17 + $0x18] sm:$0xf]
        %v1997 = vld [vmem:[#allocation17 + $0x1c] sm:$0xf]
        %v1998 = vld [vmem:[#allocation17 + $0x20] sm:$0xf]
        %v1999 = vld [vmem:[#allocation17 + $0x24] sm:$0xf]
        %v2000 = vld [vmem:[#allocation17 + $0x28] sm:$0xf]
        %v2001 = vld [vmem:[#allocation17 + $0x2c] sm:$0xf]
        %v2002 = vld [vmem:[#allocation17 + $0x30] sm:$0xf]
        %v2003 = vld [vmem:[#allocation17 + $0x34] sm:$0xf]
        %v2004 = vld [vmem:[#allocation17 + $0x38] sm:$0xf]
        %v2005 = vld [vmem:[#allocation17 + $0x3c] sm:$0xf]
        %v2006 = vld [vmem:[#allocation17 + $0x40] sm:$0xf]
        %v2007 = vld [vmem:[#allocation17 + $0x44] sm:$0xf]
        %v2008 = vld [vmem:[#allocation17 + $0x48] sm:$0xf]
        %v2009 = vld [vmem:[#allocation17 + $0x4c] sm:$0xf]
        %v2010 = vld [vmem:[#allocation17 + $0x50] sm:$0xf]
        %v2011 = vld [vmem:[#allocation17 + $0x54] sm:$0xf]
        %v2012 = vld [vmem:[#allocation17 + $0x58] sm:$0xf]
        %v2013 = vld [vmem:[#allocation17 + $0x5c] sm:$0xf]
        %v2014 = vld [vmem:[#allocation17 + $0x60] sm:$0xf]
        %v2015 = vld [vmem:[#allocation17 + $0x64] sm:$0xf]
        %v2016 = vld [vmem:[#allocation17 + $0x68] sm:$0xf]
        %v2017 = vld [vmem:[#allocation17 + $0x6c] sm:$0xf]
        %v2018 = vld [vmem:[#allocation17 + $0x70] sm:$0xf]
        %v2019 = vld [vmem:[#allocation17 + $0x74] sm:$0xf]
        %v2020 = vld [vmem:[#allocation17 + $0x78] sm:$0xf]
        %v2021 = vld [vmem:[#allocation17 + $0x7c] sm:$0xf]
        %v2022 = vld [vmem:[%s17] sm:$0x1]
        %v2024 = vlaneseq
        %v2025 = vshrl.u32 %v2024, 7
        %v2026 = vsub.s32 0, %v2025
        %v2027 = vrot.slane %v2022, %v2026
        %v2061 = vunpack.c.l.b16 %v1990
        %v2062 = vunpack.c.l.b16 %v1991
        %v2063 = vunpack.c.l.b16 %v1992
        %v2064 = vunpack.c.l.b16 %v1993
        %v2065 = vunpack.c.l.b16 %v1994
        %v2066 = vunpack.c.l.b16 %v1995
        %v2067 = vunpack.c.l.b16 %v1996
        %v2068 = vunpack.c.l.b16 %v1997
        %v2069 = vunpack.c.l.b16 %v1998
        %v2070 = vunpack.c.l.b16 %v1999
        %v2071 = vunpack.c.l.b16 %v2000
        %v2072 = vunpack.c.l.b16 %v2001
        %v2073 = vunpack.c.l.b16 %v2002
        %v2074 = vunpack.c.l.b16 %v2003
        %v2075 = vunpack.c.l.b16 %v2004
        %v2076 = vunpack.c.l.b16 %v2005
        %v2077 = vunpack.c.l.b16 %v2006
        %v2078 = vunpack.c.l.b16 %v2007
        %v2079 = vunpack.c.l.b16 %v2008
        %v2080 = vunpack.c.l.b16 %v2009
        %v2081 = vunpack.c.l.b16 %v2010
        %v2082 = vunpack.c.l.b16 %v2011
        %v2083 = vunpack.c.l.b16 %v2012
        %v2084 = vunpack.c.l.b16 %v2013
        %v2085 = vunpack.c.l.b16 %v2014
        %v2086 = vunpack.c.l.b16 %v2015
        %v2087 = vunpack.c.l.b16 %v2016
        %v2088 = vunpack.c.l.b16 %v2017
        %v2089 = vunpack.c.l.b16 %v2018
        %v2090 = vunpack.c.l.b16 %v2019
        %v2091 = vunpack.c.l.b16 %v2020
        %v2092 = vunpack.c.l.b16 %v2021
        %v2093 = vpack.c.b16 %v2062, %v2061
        %v2094 = vpack.c.b16 %v2064, %v2063
        %v2095 = vpack.c.b16 %v2066, %v2065
        %v2096 = vpack.c.b16 %v2068, %v2067
        %v2097 = vpack.c.b16 %v2070, %v2069
        %v2098 = vpack.c.b16 %v2072, %v2071
        %v2099 = vpack.c.b16 %v2074, %v2073
        %v2100 = vpack.c.b16 %v2076, %v2075
        %v2101 = vpack.c.b16 %v2078, %v2077
        %v2102 = vpack.c.b16 %v2080, %v2079
        %v2103 = vpack.c.b16 %v2082, %v2081
        %v2104 = vpack.c.b16 %v2084, %v2083
        %v2105 = vpack.c.b16 %v2086, %v2085
        %v2106 = vpack.c.b16 %v2088, %v2087
        %v2107 = vpack.c.b16 %v2090, %v2089
        %v2108 = vpack.c.b16 %v2092, %v2091
        %2125 = vmatprep.subr.bf16.mxu0 0
        %2126 = vmatpush1.bf16.msra.mxu0 %v2093
        %2127 = vmatprep.subr.bf16.mxu0 0
        %2128 = vmatpush1.bf16.msra.mxu0 %v2094
        %2129 = vmatprep.subr.bf16.mxu0 0
        %2130 = vmatpush1.bf16.msra.mxu0 %v2095
        %2131 = vmatprep.subr.bf16.mxu0 0
        %2132 = vmatpush1.bf16.msra.mxu0 %v2096
        %2133 = vmatprep.subr.bf16.mxu0 0
        %2134 = vmatpush1.bf16.msra.mxu0 %v2097
        %2135 = vmatprep.subr.bf16.mxu0 0
        %2136 = vmatpush1.bf16.msra.mxu0 %v2098
        %2137 = vmatprep.subr.bf16.mxu0 0
        %2138 = vmatpush1.bf16.msra.mxu0 %v2099
        %2139 = vmatprep.subr.bf16.mxu0 0
        %2140 = vmatpush1.bf16.msra.mxu0 %v2100
        %2141 = vmatprep.subr.bf16.mxu0 0
        %2142 = vmatpush1.bf16.msra.mxu0 %v2101
        %2143 = vmatprep.subr.bf16.mxu0 0
        %2144 = vmatpush1.bf16.msra.mxu0 %v2102
        %2145 = vmatprep.subr.bf16.mxu0 0
        %2146 = vmatpush1.bf16.msra.mxu0 %v2103
        %2147 = vmatprep.subr.bf16.mxu0 0
        %2148 = vmatpush1.bf16.msra.mxu0 %v2104
        %2149 = vmatprep.subr.bf16.mxu0 0
        %2150 = vmatpush1.bf16.msra.mxu0 %v2105
        %2151 = vmatprep.subr.bf16.mxu0 0
        %2152 = vmatpush1.bf16.msra.mxu0 %v2106
        %2153 = vmatprep.subr.bf16.mxu0 0
        %2154 = vmatpush1.bf16.msra.mxu0 %v2107
        %2155 = vmatprep.subr.bf16.mxu0 0
        %2156 = vmatpush1.bf16.msra.mxu0 %v2108
        %2157 = vmatprep.mubr.bf16.mxu0 %v1989
        %2158 = vmatmul.mubr.bf16.gmra.mrb[0].mxu0 %v1988
        %v2159 = vpop.f32.mrb[0].mxu0
        %v2160 = vadd.f32 %v2027, %v2159
        %v2161 = vpop.f32.mrb[0].mxu0
        %v2162 = vpop.f32.mrb[0].mxu0
        %v2163 = vadd.f32 %v2027, %v2162
        %v2164 = vpop.f32.mrb[0].mxu0
        %2165 = vdwg.mxu0
        %v2166 = vadd.f32 %v1686, %v2160
        %v2167 = vadd.f32 %v1687, %v2163
        %2168 = vst [vmem:[%s709] sm:$0xff] %v2166
        %2169 = vst [vmem:[%s709 + $0x8] sm:$0xff] %v2167
        %s2170 = sand.u32 %s430, 1
        %s2171 = scalar_lea.sflag [#allocation5], %s2170
        %s2172 = sand.u32 %s430, 1
        %s2173 = smul.addr %s2172, 16
        %s2174 = scalar_lea.vmem [#allocation18], %s2173
        // Predicated region
        $region129: #{tpu_custom_call.1} parent=91 // pred_check
          %p2175 = pneg %p440
        $region130: #{tpu_custom_call.1} parent=91 // pred_check_branch
          %2177 = sbr.rel (%p2175) target = $region132
        $region131: #{tpu_custom_call.1} parent=91 // pred_region
          %s2179 = ssub.s32 256, 256
          %2180 = vsyncadd %s2171, %s2179
          %s2181 = smul.addr %s39, 2
          %s2182 = smul.addr %s2181, 128
          %s2183 = scalar_lea.hbm %s18, %s2182
          %s2184 = sshll.u32 %s2174, 4
          %s2185 = int_to_ptr.vmem [resolvable:$true] %s2184
          %2190 = dma.vmem_to_hbm [thread:$0]  %s2185, 256, %s2183, %s2171, 128, 128, 8
        $region132: #{tpu_custom_call.1} parent=91 // pred_fallthru
          _
      $region92: #{tpu_custom_call.1} parent=5 // pred_fallthru
        _
      %p2191 = scmp.le.s32.totalorder 2, %s34
      // Predicated region
      $region133: #{tpu_custom_call.1} parent=5 // pred_check
        %p2192 = pneg %p2191
      $region134: #{tpu_custom_call.1} parent=5 // pred_check_branch
        %2194 = sbr.rel (%p2192) target = $region136
      $region135: #{tpu_custom_call.1} parent=5 // pred_region
        %s2195 = ssub.s32 %s34, 2
        // Predicated region
        $region137: #{tpu_custom_call.1} parent=135 // pred_check
          %p2196 = pneg %p446
        $region138: #{tpu_custom_call.1} parent=135 // pred_check_branch
          %2198 = sbr.rel (%p2196) target = $region140
        $region139: #{tpu_custom_call.1} parent=135 // pred_region
          %s2199 = sand.u32 %s431, 1
          %s2200 = scalar_lea.sflag [#allocation5], %s2199
          %s2201 = sand.u32 %s431, 1
          %s2202 = smul.addr %s2201, 16
          %s2203 = scalar_lea.vmem [#allocation18], %s2202
          %2204 = dma.done %s2200, 256
        $region140: #{tpu_custom_call.1} parent=135 // pred_fallthru
          _
      $region136: #{tpu_custom_call.1} parent=5 // pred_fallthru
        _
    $region6: #{tpu_custom_call.1} parent=1 // loop_footer
      %s38 = sadd.s32 1, %s34
    $region7: #{tpu_custom_call.1} parent=1 // loop_footer_branch
      %33 = sbr.rel target = $region3
    $region8: #{tpu_custom_call.1} parent=1 // loop_exit
      _
    %2205 = vsyncpa [#allocation4], 1
    %s2206 = scalar_lea.sflag [#allocation4], 1
    %2207 = vsyncpa %s2206, 1
    %2208 = vsyncpa [#allocation7], 1
    %2209 = vsyncpa [#allocation10], 1
    %2210 = vsyncpa [#allocation13], 1
    %2211 = vsyncpa [#allocation16], 1
    %2212 = vsyncpa [#allocation5], 1
    %s2213 = scalar_lea.sflag [#allocation5], 1
    %2214 = vsyncpa %s2213, 1

</llo_original>
